<compile_context>
chip_gen: v7x
topology: tpu7x:2x2x1
jax: 0.10.0
libtpu: 0.0.40
codegen_flags: <defaults>
</compile_context>

<pallas_src>
import jax
import jax.numpy as jnp
from jax.experimental import pallas as pl
from jax.experimental.pallas import tpu as pltpu

CHANNELS = 1
IMG_SIZE = 28
IN_DIM = CHANNELS * IMG_SIZE * IMG_SIZE  # 784 (multiple of 8, lane-splittable K)
H1 = 512
H2 = 256
OUT = 1

# Max batch tile. Per-grid-step overhead is ~0.35 us, per-tile compute at
# TM=1024 is a few us on v6e/v7x, so overhead is well amortized while the
# whole working set stays under ~10 MiB of VMEM.
TM_MAX = 1024


def _choose_tm(batch):
    """Pick a batch tile: big (amortize pipeline overhead), multiple of 8,
    and keeping >= 2 grid steps when the batch allows it (v7x megacore)."""
    if batch <= 8:
        return batch                      # tiny batch: single full-dim tile
    tm = max(8, ((batch + 1) // 2) // 8 * 8)
    return min(TM_MAX, tm)


def discriminator_kernel(x_ref, w1_ref, b1_ref, w2_ref, b2_ref, w3t_ref, b3_ref, o_ref):
    # x_ref: (TM, 784) f32 (or bf16 if the producer already emits bf16)
    # w1/w2: bf16 (in, out); b1/b2: f32 (1, out)
    # w3t:   (1, 256) f32;   b3: (1, 1) f32
    # o_ref: (TM, 1) f32
    x = x_ref[...].astype(jnp.bfloat16)   # no-op if upstream already produces bf16

    h1 = jnp.dot(x, w1_ref[...], preferred_element_type=jnp.float32) + b1_ref[...]
    h1 = jnp.where(h1 > 0, h1, 0.2 * h1)

    h2 = jnp.dot(h1.astype(jnp.bfloat16), w2_ref[...],
                 preferred_element_type=jnp.float32) + b2_ref[...]
    h2 = jnp.where(h2 > 0, h2, 0.2 * h2)

    # Layer 3 (256 -> 1): VPU multiply + XLU lane-reduce. Avoids a padded
    # 128-wide MXU pass and directly yields the (TM, 1) result slab.
    h3 = jnp.sum(h2 * w3t_ref[...], axis=-1, keepdims=True) + b3_ref[...]

    # Exact sigmoid (exp on EUP; one f32 divide). Matches torch.sigmoid closely.
    o_ref[...] = 1.0 / (1.0 + jnp.exp(-h3))


def prepare_params(params):
    """One-time conversion of f32 (in, out) params to the kernel layout/dtypes.
    Hoisted out of the per-call forward path (bf16 matmul operands; w3 stored
    transposed as a (1, 256) row for the VPU layer-3 path)."""
    w1, b1, w2, b2, w3, b3 = params
    return (
        w1.astype(jnp.bfloat16),
        b1.astype(jnp.float32),
        w2.astype(jnp.bfloat16),
        b2.astype(jnp.float32),
        w3.reshape(1, H2).astype(jnp.float32),
        b3.reshape(1, 1).astype(jnp.float32),
    )


def discriminator_forward(img, prepared_params):
    """img: (B, C, H, W).  Returns (B, 1) validity scores (f32)."""
    B = img.shape[0]
    x = img.reshape(B, -1)                # (B, 784); metadata-only, no pad/cast pass
    w1, b1, w2, b2, w3t, b3 = prepared_params

    tm = _choose_tm(B)
    grid = (pl.cdiv(B, tm),)              # ragged last tile handled by masking

    resident = lambda shape: pl.BlockSpec(shape, lambda i: (0, 0))

    return pl.pallas_call(
        discriminator_kernel,
        out_shape=jax.ShapeDtypeStruct((B, OUT), jnp.float32),
        grid=grid,
        in_specs=[
            pl.BlockSpec((tm, IN_DIM), lambda i: (i, 0)),   # x tile (double-buffered)
            resident((IN_DIM, H1)),                         # weights/biases: DMA'd once,
            resident((1, H1)),                              # VMEM-resident across steps
            resident((H1, H2)),
            resident((1, H2)),
            resident((1, H2)),                              # w3^T
            resident((1, OUT)),                             # b3
        ],
        out_specs=pl.BlockSpec((tm, OUT), lambda i: (i, 0)),
        compiler_params=pltpu.CompilerParams(
            dimension_semantics=("parallel",),   # shard batch tiles across TCs (v7x)
            vmem_limit_bytes=32 << 20,           # actual need <~10 MiB at TM=1024
        ),
    )(x, w1, b1, w2, b2, w3t, b3)


def init_params(key):
    """Deterministic init matching PyTorch nn.Linear default: U(-1/sqrt(fan_in), 1/sqrt(fan_in))."""
    ks = jax.random.split(key, 6)

    def linear(kw, kb, fan_in, fan_out):
        bound = 1.0 / jnp.sqrt(fan_in)
        w = jax.random.uniform(kw, (fan_in, fan_out), jnp.float32, -bound, bound)
        b = jax.random.uniform(kb, (1, fan_out), jnp.float32, -bound, bound)
        return w, b

    w1, b1 = linear(ks[0], ks[1], IN_DIM, H1)
    w2, b2 = linear(ks[2], ks[3], H1, H2)
    w3, b3 = linear(ks[4], ks[5], H2, OUT)
    return (w1, b1, w2, b2, w3, b3)


def reference_forward(img, params):
    """Pure-JAX f32 reference for correctness check."""
    w1, b1, w2, b2, w3, b3 = params
    x = img.reshape(img.shape[0], -1).astype(jnp.float32)
    h = x @ w1 + b1
    h = jnp.where(h > 0, h, 0.2 * h)
    h = h @ w2 + b2
    h = jnp.where(h > 0, h, 0.2 * h)
    return jax.nn.sigmoid(h @ w3 + b3)


if __name__ == "__main__":
    key = jax.random.PRNGKey(0)
    k_params, k_img = jax.random.split(key)

    params = init_params(k_params)
    prepared = prepare_params(params)   # one-time weight cast/layout

    # Small batch consistent with the module's (1, 28, 28) image shape.
    img = jax.random.normal(k_img, (2, CHANNELS, IMG_SIZE, IMG_SIZE), jnp.float32)

    fwd = jax.jit(discriminator_forward)
    out = jax.block_until_ready(fwd(img, prepared))

    ref = reference_forward(img, params)
    assert out.shape == (2, OUT), out.shape
    # bf16 matmul operands -> loosened tolerance vs the f32 reference.
    assert jnp.allclose(out, ref, atol=2e-2, rtol=2e-2), (out, ref)

    print("KERNEL_OK")
</pallas_src>

<mosaic_0001>
module attributes {stable_mosaic.version = 11 : i64} {
  func.func @discriminator_kernel(%arg0: i32, %arg1: memref<2x784xf32, #tpu.memory_space<vmem>>, %arg2: memref<784x512xbf16, #tpu.memory_space<vmem>>, %arg3: memref<1x512xf32, #tpu.memory_space<vmem>>, %arg4: memref<512x256xbf16, #tpu.memory_space<vmem>>, %arg5: memref<1x256xf32, #tpu.memory_space<vmem>>, %arg6: memref<1x256xf32, #tpu.memory_space<vmem>>, %arg7: memref<1x1xf32, #tpu.memory_space<vmem>>, %arg8: memref<2x1xf32, #tpu.memory_space<vmem>>) attributes {dimension_semantics = [#tpu.dimension_semantics<parallel>], iteration_bounds = array<i64: 1>, scalar_prefetch = 0 : i64, scratch_operands = 0 : i64, tpu.core_type = #tpu.core_type<tc>, window_params = [{transform_indices = @transform_0, window_bounds = array<i64: 2, 784>}, {pipeline_mode = #tpu.pipeline_mode<synchronous>, transform_indices = @transform_1, window_bounds = array<i64: 784, 512>}, {pipeline_mode = #tpu.pipeline_mode<synchronous>, transform_indices = @transform_2, window_bounds = array<i64: 1, 512>}, {pipeline_mode = #tpu.pipeline_mode<synchronous>, transform_indices = @transform_3, window_bounds = array<i64: 512, 256>}, {pipeline_mode = #tpu.pipeline_mode<synchronous>, transform_indices = @transform_4, window_bounds = array<i64: 1, 256>}, {pipeline_mode = #tpu.pipeline_mode<synchronous>, transform_indices = @transform_5, window_bounds = array<i64: 1, 256>}, {pipeline_mode = #tpu.pipeline_mode<synchronous>, transform_indices = @transform_6, window_bounds = array<i64: 1, 1>}, {transform_indices = @transform_7, window_bounds = array<i64: 2, 1>}]} {
    %c0 = arith.constant 0 : index
    %c0_0 = arith.constant 0 : index
    %0 = vector.load %arg1[%c0, %c0_0] : memref<2x784xf32, #tpu.memory_space<vmem>>, vector<2x784xf32>
    %1 = arith.truncf %0 : vector<2x784xf32> to vector<2x784xbf16>
    %c0_1 = arith.constant 0 : index
    %c0_2 = arith.constant 0 : index
    %2 = vector.load %arg2[%c0_1, %c0_2] : memref<784x512xbf16, #tpu.memory_space<vmem>>, vector<784x512xbf16>
    %cst = arith.constant dense<0.000000e+00> : vector<2x512xf32>
    %3 = tpu.matmul %1, %2, %cst {dimension_numbers = #tpu.dot_dimension_numbers<[1], [0], [0], [1], [0, 0, 1, 1], [], []>} : vector<2x784xbf16>, vector<784x512xbf16>, vector<2x512xf32> -> vector<2x512xf32>
    %c0_3 = arith.constant 0 : index
    %c0_4 = arith.constant 0 : index
    %4 = vector.load %arg3[%c0_3, %c0_4] : memref<1x512xf32, #tpu.memory_space<vmem>>, vector<1x512xf32>
    %5 = vector.broadcast %4 : vector<1x512xf32> to vector<2x512xf32>
    %6 = arith.addf %3, %5 : vector<2x512xf32>
    %cst_5 = arith.constant 0.000000e+00 : f32
    %7 = vector.broadcast %cst_5 : f32 to vector<2x512xf32>
    %8 = arith.cmpf ogt, %6, %7 : vector<2x512xf32>
    %cst_6 = arith.constant 2.000000e-01 : f32
    %9 = vector.broadcast %cst_6 : f32 to vector<2x512xf32>
    %10 = arith.mulf %9, %6 : vector<2x512xf32>
    %11 = arith.select %8, %6, %10 : vector<2x512xi1>, vector<2x512xf32>
    %12 = arith.truncf %11 : vector<2x512xf32> to vector<2x512xbf16>
    %c0_7 = arith.constant 0 : index
    %c0_8 = arith.constant 0 : index
    %13 = vector.load %arg4[%c0_7, %c0_8] : memref<512x256xbf16, #tpu.memory_space<vmem>>, vector<512x256xbf16>
    %cst_9 = arith.constant dense<0.000000e+00> : vector<2x256xf32>
    %14 = tpu.matmul %12, %13, %cst_9 {dimension_numbers = #tpu.dot_dimension_numbers<[1], [0], [0], [1], [0, 0, 1, 1], [], []>} : vector<2x512xbf16>, vector<512x256xbf16>, vector<2x256xf32> -> vector<2x256xf32>
    %c0_10 = arith.constant 0 : index
    %c0_11 = arith.constant 0 : index
    %15 = vector.load %arg5[%c0_10, %c0_11] : memref<1x256xf32, #tpu.memory_space<vmem>>, vector<1x256xf32>
    %16 = vector.broadcast %15 : vector<1x256xf32> to vector<2x256xf32>
    %17 = arith.addf %14, %16 : vector<2x256xf32>
    %cst_12 = arith.constant 0.000000e+00 : f32
    %18 = vector.broadcast %cst_12 : f32 to vector<2x256xf32>
    %19 = arith.cmpf ogt, %17, %18 : vector<2x256xf32>
    %cst_13 = arith.constant 2.000000e-01 : f32
    %20 = vector.broadcast %cst_13 : f32 to vector<2x256xf32>
    %21 = arith.mulf %20, %17 : vector<2x256xf32>
    %22 = arith.select %19, %17, %21 : vector<2x256xi1>, vector<2x256xf32>
    %c0_14 = arith.constant 0 : index
    %c0_15 = arith.constant 0 : index
    %23 = vector.load %arg6[%c0_14, %c0_15] : memref<1x256xf32, #tpu.memory_space<vmem>>, vector<1x256xf32>
    %24 = vector.broadcast %23 : vector<1x256xf32> to vector<2x256xf32>
    %25 = arith.mulf %22, %24 : vector<2x256xf32>
    %cst_16 = arith.constant dense<0.000000e+00> : vector<2xf32>
    %26 = vector.multi_reduction <add>, %25, %cst_16 [1] : vector<2x256xf32> to vector<2xf32>
    %27 = vector.shape_cast %26 : vector<2xf32> to vector<2x1xf32>
    %c0_17 = arith.constant 0 : index
    %c0_18 = arith.constant 0 : index
    %28 = vector.load %arg7[%c0_17, %c0_18] : memref<1x1xf32, #tpu.memory_space<vmem>>, vector<1x1xf32>
    %29 = vector.broadcast %28 : vector<1x1xf32> to vector<2x1xf32>
    %30 = arith.addf %27, %29 : vector<2x1xf32>
    %cst_19 = arith.constant 0.000000e+00 : f32
    %31 = vector.broadcast %cst_19 : f32 to vector<2x1xf32>
    %32 = arith.subf %31, %30 : vector<2x1xf32>
    %33 = math.exp %32 : vector<2x1xf32>
    %cst_20 = arith.constant 1.000000e+00 : f32
    %34 = vector.broadcast %cst_20 : f32 to vector<2x1xf32>
    %35 = arith.addf %34, %33 : vector<2x1xf32>
    %cst_21 = arith.constant 1.000000e+00 : f32
    %36 = vector.broadcast %cst_21 : f32 to vector<2x1xf32>
    %37 = arith.divf %36, %35 : vector<2x1xf32>
    %c0_22 = arith.constant 0 : index
    %c0_23 = arith.constant 0 : index
    %38 = vector.load %arg8[%c0_22, %c0_23] : memref<2x1xf32, #tpu.memory_space<vmem>>, vector<2x1xf32>
    tpu.vector_store %arg8[%c0_22, %c0_23], %37 {strides = array<i32>} : memref<2x1xf32, #tpu.memory_space<vmem>>, vector<2x1xf32>,
    return
  }
  func.func @transform_0(%arg0: i32) -> (i32, i32) {
    %c0_i32 = arith.constant 0 : i32
    %c0_i32_0 = arith.constant 0 : i32
    return %arg0, %c0_i32 : i32, i32
  }
  func.func @transform_1(%arg0: i32) -> (i32, i32) {
    %c0_i32 = arith.constant 0 : i32
    %c0_i32_0 = arith.constant 0 : i32
    %c0_i32_1 = arith.constant 0 : i32
    return %c0_i32, %c0_i32_0 : i32, i32
  }
  func.func @transform_2(%arg0: i32) -> (i32, i32) {
    %c0_i32 = arith.constant 0 : i32
    %c0_i32_0 = arith.constant 0 : i32
    %c0_i32_1 = arith.constant 0 : i32
    return %c0_i32, %c0_i32_0 : i32, i32
  }
  func.func @transform_3(%arg0: i32) -> (i32, i32) {
    %c0_i32 = arith.constant 0 : i32
    %c0_i32_0 = arith.constant 0 : i32
    %c0_i32_1 = arith.constant 0 : i32
    return %c0_i32, %c0_i32_0 : i32, i32
  }
  func.func @transform_4(%arg0: i32) -> (i32, i32) {
    %c0_i32 = arith.constant 0 : i32
    %c0_i32_0 = arith.constant 0 : i32
    %c0_i32_1 = arith.constant 0 : i32
    return %c0_i32, %c0_i32_0 : i32, i32
  }
  func.func @transform_5(%arg0: i32) -> (i32, i32) {
    %c0_i32 = arith.constant 0 : i32
    %c0_i32_0 = arith.constant 0 : i32
    %c0_i32_1 = arith.constant 0 : i32
    return %c0_i32, %c0_i32_0 : i32, i32
  }
  func.func @transform_6(%arg0: i32) -> (i32, i32) {
    %c0_i32 = arith.constant 0 : i32
    %c0_i32_0 = arith.constant 0 : i32
    %c0_i32_1 = arith.constant 0 : i32
    return %c0_i32, %c0_i32_0 : i32, i32
  }
  func.func @transform_7(%arg0: i32) -> (i32, i32) {
    %c0_i32 = arith.constant 0 : i32
    %c0_i32_0 = arith.constant 0 : i32
    return %arg0, %c0_i32 : i32, i32
  }
}

</mosaic_0001>

<llo_original>
// kernel: discriminator_forward.1
$region0: #{discriminator_forward.1}
  #allocation0 [shape = 'u32[]', space=smem, size = 0x4, offset = 0x4, fixed_abs, tag = 'smem constant byte address 0x4 - core index']
  #allocation1 [shape = 'u32[144,128]{1,0:T(1,128)}', space=vmem, size = 0x12000, scoped, tag = 'internal scratch']
  #allocation2 [shape = 'f32[1,1]{1,0:T(1,128)S(1)}', space=vmem, size = 0x200, scoped, tag = 'scoped memory for discriminator_forward.1']
  %s0 = inlined_call_operand.vmem [shape: f32[2,784], index: 0, kind: input, shape index: {}]
  %s1 = inlined_call_operand.hbm [shape: bf16[784,512], index: 1, kind: input, shape index: {}]
  %s2 = inlined_call_operand.vmem [shape: f32[1,512], index: 2, kind: input, shape index: {}]
  %s3 = inlined_call_operand.hbm [shape: bf16[512,256], index: 3, kind: input, shape index: {}]
  %s4 = inlined_call_operand.vmem [shape: f32[1,256], index: 4, kind: input, shape index: {}]
  %s5 = inlined_call_operand.vmem [shape: f32[1,256], index: 5, kind: input, shape index: {}]
  %s6 = inlined_call_operand.<no memory space> [shape: f32[1,1], index: 6, kind: input, shape index: {}]
  %s7 = inlined_call_operand.vmem [shape: f32[2,1], index: 7, kind: output, shape index: {}]
  %s8 = sld [smem:[#allocation0]]
  $region46: #{discriminator_forward.1} parent=0
    _
  %s10 = ssub.s32 1, %s8
  %s11 = scalar_select 0, %s10, %s8
  %v12 = vstv %s6
  %13 = vst [vmem:[#allocation2] sm:$0x1] %v12
  $region1: #{discriminator_forward.1} parent=0
    #allocation3 [shape = 'u8[802816]{0}', space=vmem, size = 0xc4000, scoped, tag = 'input window, operand 1, single buffered']
    #allocation4 [shape = 's32[1]{0}', space=sflag, size = 0x4, scoped, tag = 'scoped memory for discriminator_forward.1']
    #allocation5 [shape = 'u8[262144]{0}', space=vmem, size = 0x40000, scoped, tag = 'input window, operand 3, single buffered']
    #allocation6 [shape = 's32[1]{0}', space=sflag, size = 0x4, scoped, tag = 'scoped memory for discriminator_forward.1']
    %14 = vsyncpa [#allocation4], 0
    %15 = vsyncpa [#allocation6], 0
    // Predicated region
    $region2: #{discriminator_forward.1} parent=1 // pred_check
      _
    $region3: #{discriminator_forward.1} parent=1 // pred_check_branch
      %17 = sbr.rel (0) target = $region5
    $region4: #{discriminator_forward.1} parent=1 // pred_region
      _
    $region5: #{discriminator_forward.1} parent=1 // pred_fallthru
      _
    // Predicated region
    $region6: #{discriminator_forward.1} parent=1 // pred_check
      _
    $region7: #{discriminator_forward.1} parent=1 // pred_check_branch
      %19 = sbr.rel (0) target = $region9
    $region8: #{discriminator_forward.1} parent=1 // pred_region
      %s21 = ssub.s32 25088, 25088
      %22 = vsyncadd [#allocation4], %s21
      %s23 = sshll.u32 [#allocation3], 4
      %s24 = int_to_ptr.vmem [resolvable:$true] %s23
      %29 = dma.hbm_to_vmem [thread:$0]  %s1, 25088, %s24, [#allocation4], 256, 256, 16
    $region9: #{discriminator_forward.1} parent=1 // pred_fallthru
      _
    // Predicated region
    $region10: #{discriminator_forward.1} parent=1 // pred_check
      _
    $region11: #{discriminator_forward.1} parent=1 // pred_check_branch
      %31 = sbr.rel (0) target = $region13
    $region12: #{discriminator_forward.1} parent=1 // pred_region
      _
    $region13: #{discriminator_forward.1} parent=1 // pred_fallthru
      _
    // Predicated region
    $region14: #{discriminator_forward.1} parent=1 // pred_check
      _
    $region15: #{discriminator_forward.1} parent=1 // pred_check_branch
      %33 = sbr.rel (0) target = $region17
    $region16: #{discriminator_forward.1} parent=1 // pred_region
      %s35 = ssub.s32 8192, 8192
      %36 = vsyncadd [#allocation6], %s35
      %s37 = sshll.u32 [#allocation5], 4
      %s38 = int_to_ptr.vmem [resolvable:$true] %s37
      %43 = dma.hbm_to_vmem [thread:$0]  %s3, 8192, %s38, [#allocation6], 128, 128, 8
    $region17: #{discriminator_forward.1} parent=1 // pred_fallthru
      _
    // Predicated region
    $region18: #{discriminator_forward.1} parent=1 // pred_check
      _
    $region19: #{discriminator_forward.1} parent=1 // pred_check_branch
      %45 = sbr.rel (0) target = $region21
    $region20: #{discriminator_forward.1} parent=1 // pred_region
      _
    $region21: #{discriminator_forward.1} parent=1 // pred_fallthru
      _
    // Predicated region
    $region22: #{discriminator_forward.1} parent=1 // pred_check
      _
    $region23: #{discriminator_forward.1} parent=1 // pred_check_branch
      %47 = sbr.rel (0) target = $region25
    $region24: #{discriminator_forward.1} parent=1 // pred_region
      _
    $region25: #{discriminator_forward.1} parent=1 // pred_fallthru
      _
    // Predicated region
    $region26: #{discriminator_forward.1} parent=1 // pred_check
      _
    $region27: #{discriminator_forward.1} parent=1 // pred_check_branch
      %49 = sbr.rel (0) target = $region29
    $region28: #{discriminator_forward.1} parent=1 // pred_region
      _
    $region29: #{discriminator_forward.1} parent=1 // pred_fallthru
      _
    // Predicated region
    $region30: #{discriminator_forward.1} parent=1 // pred_check
      _
    $region31: #{discriminator_forward.1} parent=1 // pred_check_branch
      %51 = sbr.rel (0) target = $region33
    $region32: #{discriminator_forward.1} parent=1 // pred_region
      %52 = dma.done [#allocation4], 25088
    $region33: #{discriminator_forward.1} parent=1 // pred_fallthru
      _
    // Predicated region
    $region34: #{discriminator_forward.1} parent=1 // pred_check
      _
    $region35: #{discriminator_forward.1} parent=1 // pred_check_branch
      %54 = sbr.rel (0) target = $region37
    $region36: #{discriminator_forward.1} parent=1 // pred_region
      %55 = dma.done [#allocation6], 8192
    $region37: #{discriminator_forward.1} parent=1 // pred_fallthru
      _
    %v57 = vld [vmem:[%s0] sm:$0xff]
    %v58 = vld [vmem:[%s0 + $0x8] sm:$0x3f]
    %v61 = vcombine.high %v57, %v57
    %v63 = vunpack.c.l.s4 1983009808
    %v64 = vunpack.c.0.s8 %v63
    %v65 = vlaneseq
    %v66 = vshrl.u32 %v65, 7
    %v67 = vsub.s32 %v64, %v66
    %v68 = vrot.slane %v57, %v67
    %v70 = vunpack.c.l.s4 1983009808
    %v71 = vunpack.c.0.s8 %v70
    %v72 = vlaneseq
    %v73 = vshrl.u32 %v72, 7
    %v74 = vsub.s32 %v71, %v73
    %v75 = vrot.slane %v61, %v74
    %v76 = vcombine.high %v68, %v68
    %v77 = vcombine.high %v75, %v75
    %v78 = vcombine.high %v58, %v58
    %v80 = vunpack.c.l.s4 1983009808
    %v81 = vunpack.c.0.s8 %v80
    %v82 = vlaneseq
    %v83 = vshrl.u32 %v82, 7
    %v84 = vsub.s32 %v81, %v83
    %v85 = vrot.slane %v58, %v84
    %v87 = vunpack.c.l.s4 1983009808
    %v88 = vunpack.c.0.s8 %v87
    %v89 = vlaneseq
    %v90 = vshrl.u32 %v89, 7
    %v91 = vsub.s32 %v88, %v90
    %v92 = vrot.slane %v78, %v91
    %v93 = vcombine.high %v85, %v85
    %v101 = vpack.c.bf16 %v68, %v68
    %v102 = vpack.c.bf16 %v76, %v76
    %v103 = vpack.c.bf16 %v75, %v75
    %v104 = vpack.c.bf16 %v77, %v77
    %v105 = vpack.c.bf16 %v85, %v85
    %v106 = vpack.c.bf16 %v93, %v93
    %v107 = vpack.c.bf16 %v92, %v92
    %v108 = vld [vmem:[#allocation3] sm:$0xff]
    %v109 = vld [vmem:[#allocation3 + $0x8] sm:$0xff]
    %v110 = vld [vmem:[#allocation3 + $0x10] sm:$0xff]
    %v111 = vld [vmem:[#allocation3 + $0x18] sm:$0xff]
    %v112 = vld [vmem:[#allocation3 + $0x20] sm:$0xff]
    %v113 = vld [vmem:[#allocation3 + $0x28] sm:$0xff]
    %v114 = vld [vmem:[#allocation3 + $0x30] sm:$0xff]
    %v115 = vld [vmem:[#allocation3 + $0x38] sm:$0xff]
    %v116 = vld [vmem:[#allocation3 + $0x40] sm:$0xff]
    %v117 = vld [vmem:[#allocation3 + $0x48] sm:$0xff]
    %v118 = vld [vmem:[#allocation3 + $0x50] sm:$0xff]
    %v119 = vld [vmem:[#allocation3 + $0x58] sm:$0xff]
    %v120 = vld [vmem:[#allocation3 + $0x60] sm:$0xff]
    %v121 = vld [vmem:[#allocation3 + $0x68] sm:$0xff]
    %v122 = vld [vmem:[#allocation3 + $0x70] sm:$0xff]
    %v123 = vld [vmem:[#allocation3 + $0x78] sm:$0xff]
    %v124 = vld [vmem:[#allocation3 + $0x80] sm:$0xff]
    %v125 = vld [vmem:[#allocation3 + $0x88] sm:$0xff]
    %v126 = vld [vmem:[#allocation3 + $0x90] sm:$0xff]
    %v127 = vld [vmem:[#allocation3 + $0x98] sm:$0xff]
    %v128 = vld [vmem:[#allocation3 + $0xa0] sm:$0xff]
    %v129 = vld [vmem:[#allocation3 + $0xa8] sm:$0xff]
    %v130 = vld [vmem:[#allocation3 + $0xb0] sm:$0xff]
    %v131 = vld [vmem:[#allocation3 + $0xb8] sm:$0xff]
    %v132 = vld [vmem:[#allocation3 + $0xc0] sm:$0xff]
    %v133 = vld [vmem:[#allocation3 + $0xc8] sm:$0xff]
    %v134 = vld [vmem:[#allocation3 + $0xd0] sm:$0xff]
    %v135 = vld [vmem:[#allocation3 + $0xd8] sm:$0xff]
    %v136 = vld [vmem:[#allocation3 + $0xe0] sm:$0xff]
    %v137 = vld [vmem:[#allocation3 + $0xe8] sm:$0xff]
    %v138 = vld [vmem:[#allocation3 + $0xf0] sm:$0xff]
    %v139 = vld [vmem:[#allocation3 + $0xf8] sm:$0xff]
    %v140 = vld [vmem:[#allocation3 + $0x100] sm:$0xff]
    %v141 = vld [vmem:[#allocation3 + $0x108] sm:$0xff]
    %v142 = vld [vmem:[#allocation3 + $0x110] sm:$0xff]
    %v143 = vld [vmem:[#allocation3 + $0x118] sm:$0xff]
    %v144 = vld [vmem:[#allocation3 + $0x120] sm:$0xff]
    %v145 = vld [vmem:[#allocation3 + $0x128] sm:$0xff]
    %v146 = vld [vmem:[#allocation3 + $0x130] sm:$0xff]
    %v147 = vld [vmem:[#allocation3 + $0x138] sm:$0xff]
    %v148 = vld [vmem:[#allocation3 + $0x140] sm:$0xff]
    %v149 = vld [vmem:[#allocation3 + $0x148] sm:$0xff]
    %v150 = vld [vmem:[#allocation3 + $0x150] sm:$0xff]
    %v151 = vld [vmem:[#allocation3 + $0x158] sm:$0xff]
    %v152 = vld [vmem:[#allocation3 + $0x160] sm:$0xff]
    %v153 = vld [vmem:[#allocation3 + $0x168] sm:$0xff]
    %v154 = vld [vmem:[#allocation3 + $0x170] sm:$0xff]
    %v155 = vld [vmem:[#allocation3 + $0x178] sm:$0xff]
    %v156 = vld [vmem:[#allocation3 + $0x180] sm:$0xff]
    %v157 = vld [vmem:[#allocation3 + $0x188] sm:$0xff]
    %v158 = vld [vmem:[#allocation3 + $0x190] sm:$0xff]
    %v159 = vld [vmem:[#allocation3 + $0x198] sm:$0xff]
    %v160 = vld [vmem:[#allocation3 + $0x1a0] sm:$0xff]
    %v161 = vld [vmem:[#allocation3 + $0x1a8] sm:$0xff]
    %v162 = vld [vmem:[#allocation3 + $0x1b0] sm:$0xff]
    %v163 = vld [vmem:[#allocation3 + $0x1b8] sm:$0xff]
    %v164 = vld [vmem:[#allocation3 + $0x1c0] sm:$0xff]
    %v165 = vld [vmem:[#allocation3 + $0x1c8] sm:$0xff]
    %v166 = vld [vmem:[#allocation3 + $0x1d0] sm:$0xff]
    %v167 = vld [vmem:[#allocation3 + $0x1d8] sm:$0xff]
    %v168 = vld [vmem:[#allocation3 + $0x1e0] sm:$0xff]
    %v169 = vld [vmem:[#allocation3 + $0x1e8] sm:$0xff]
    %v170 = vld [vmem:[#allocation3 + $0x1f0] sm:$0xff]
    %v171 = vld [vmem:[#allocation3 + $0x1f8] sm:$0xff]
    %v172 = vld [vmem:[#allocation3 + $0x200] sm:$0xff]
    %v173 = vld [vmem:[#allocation3 + $0x208] sm:$0xff]
    %v174 = vld [vmem:[#allocation3 + $0x210] sm:$0xff]
    %v175 = vld [vmem:[#allocation3 + $0x218] sm:$0xff]
    %v176 = vld [vmem:[#allocation3 + $0x220] sm:$0xff]
    %v177 = vld [vmem:[#allocation3 + $0x228] sm:$0xff]
    %v178 = vld [vmem:[#allocation3 + $0x230] sm:$0xff]
    %v179 = vld [vmem:[#allocation3 + $0x238] sm:$0xff]
    %v180 = vld [vmem:[#allocation3 + $0x240] sm:$0xff]
    %v181 = vld [vmem:[#allocation3 + $0x248] sm:$0xff]
    %v182 = vld [vmem:[#allocation3 + $0x250] sm:$0xff]
    %v183 = vld [vmem:[#allocation3 + $0x258] sm:$0xff]
    %v184 = vld [vmem:[#allocation3 + $0x260] sm:$0xff]
    %v185 = vld [vmem:[#allocation3 + $0x268] sm:$0xff]
    %v186 = vld [vmem:[#allocation3 + $0x270] sm:$0xff]
    %v187 = vld [vmem:[#allocation3 + $0x278] sm:$0xff]
    %v188 = vld [vmem:[#allocation3 + $0x280] sm:$0xff]
    %v189 = vld [vmem:[#allocation3 + $0x288] sm:$0xff]
    %v190 = vld [vmem:[#allocation3 + $0x290] sm:$0xff]
    %v191 = vld [vmem:[#allocation3 + $0x298] sm:$0xff]
    %v192 = vld [vmem:[#allocation3 + $0x2a0] sm:$0xff]
    %v193 = vld [vmem:[#allocation3 + $0x2a8] sm:$0xff]
    %v194 = vld [vmem:[#allocation3 + $0x2b0] sm:$0xff]
    %v195 = vld [vmem:[#allocation3 + $0x2b8] sm:$0xff]
    %v196 = vld [vmem:[#allocation3 + $0x2c0] sm:$0xff]
    %v197 = vld [vmem:[#allocation3 + $0x2c8] sm:$0xff]
    %v198 = vld [vmem:[#allocation3 + $0x2d0] sm:$0xff]
    %v199 = vld [vmem:[#allocation3 + $0x2d8] sm:$0xff]
    %v200 = vld [vmem:[#allocation3 + $0x2e0] sm:$0xff]
    %v201 = vld [vmem:[#allocation3 + $0x2e8] sm:$0xff]
    %v202 = vld [vmem:[#allocation3 + $0x2f0] sm:$0xff]
    %v203 = vld [vmem:[#allocation3 + $0x2f8] sm:$0xff]
    %v204 = vld [vmem:[#allocation3 + $0x300] sm:$0xff]
    %v205 = vld [vmem:[#allocation3 + $0x308] sm:$0xff]
    %v206 = vld [vmem:[#allocation3 + $0x310] sm:$0xff]
    %v207 = vld [vmem:[#allocation3 + $0x318] sm:$0xff]
    %v208 = vld [vmem:[#allocation3 + $0x320] sm:$0xff]
    %v209 = vld [vmem:[#allocation3 + $0x328] sm:$0xff]
    %v210 = vld [vmem:[#allocation3 + $0x330] sm:$0xff]
    %v211 = vld [vmem:[#allocation3 + $0x338] sm:$0xff]
    %v212 = vld [vmem:[#allocation3 + $0x340] sm:$0xff]
    %v213 = vld [vmem:[#allocation3 + $0x348] sm:$0xff]
    %v214 = vld [vmem:[#allocation3 + $0x350] sm:$0xff]
    %v215 = vld [vmem:[#allocation3 + $0x358] sm:$0xff]
    %v216 = vld [vmem:[#allocation3 + $0x360] sm:$0xff]
    %v217 = vld [vmem:[#allocation3 + $0x368] sm:$0xff]
    %v218 = vld [vmem:[#allocation3 + $0x370] sm:$0xff]
    %v219 = vld [vmem:[#allocation3 + $0x378] sm:$0xff]
    %v220 = vld [vmem:[#allocation3 + $0x380] sm:$0xff]
    %v221 = vld [vmem:[#allocation3 + $0x388] sm:$0xff]
    %v222 = vld [vmem:[#allocation3 + $0x390] sm:$0xff]
    %v223 = vld [vmem:[#allocation3 + $0x398] sm:$0xff]
    %v224 = vld [vmem:[#allocation3 + $0x3a0] sm:$0xff]
    %v225 = vld [vmem:[#allocation3 + $0x3a8] sm:$0xff]
    %v226 = vld [vmem:[#allocation3 + $0x3b0] sm:$0xff]
    %v227 = vld [vmem:[#allocation3 + $0x3b8] sm:$0xff]
    %v228 = vld [vmem:[#allocation3 + $0x3c0] sm:$0xff]
    %v229 = vld [vmem:[#allocation3 + $0x3c8] sm:$0xff]
    %v230 = vld [vmem:[#allocation3 + $0x3d0] sm:$0xff]
    %v231 = vld [vmem:[#allocation3 + $0x3d8] sm:$0xff]
    %v232 = vld [vmem:[#allocation3 + $0x3e0] sm:$0xff]
    %v233 = vld [vmem:[#allocation3 + $0x3e8] sm:$0xff]
    %v234 = vld [vmem:[#allocation3 + $0x3f0] sm:$0xff]
    %v235 = vld [vmem:[#allocation3 + $0x3f8] sm:$0xff]
    %v236 = vld [vmem:[#allocation3 + $0x400] sm:$0xff]
    %v237 = vld [vmem:[#allocation3 + $0x408] sm:$0xff]
    %v238 = vld [vmem:[#allocation3 + $0x410] sm:$0xff]
    %v239 = vld [vmem:[#allocation3 + $0x418] sm:$0xff]
    %v240 = vld [vmem:[#allocation3 + $0x420] sm:$0xff]
    %v241 = vld [vmem:[#allocation3 + $0x428] sm:$0xff]
    %v242 = vld [vmem:[#allocation3 + $0x430] sm:$0xff]
    %v243 = vld [vmem:[#allocation3 + $0x438] sm:$0xff]
    %v244 = vld [vmem:[#allocation3 + $0x440] sm:$0xff]
    %v245 = vld [vmem:[#allocation3 + $0x448] sm:$0xff]
    %v246 = vld [vmem:[#allocation3 + $0x450] sm:$0xff]
    %v247 = vld [vmem:[#allocation3 + $0x458] sm:$0xff]
    %v248 = vld [vmem:[#allocation3 + $0x460] sm:$0xff]
    %v249 = vld [vmem:[#allocation3 + $0x468] sm:$0xff]
    %v250 = vld [vmem:[#allocation3 + $0x470] sm:$0xff]
    %v251 = vld [vmem:[#allocation3 + $0x478] sm:$0xff]
    %v252 = vld [vmem:[#allocation3 + $0x480] sm:$0xff]
    %v253 = vld [vmem:[#allocation3 + $0x488] sm:$0xff]
    %v254 = vld [vmem:[#allocation3 + $0x490] sm:$0xff]
    %v255 = vld [vmem:[#allocation3 + $0x498] sm:$0xff]
    %v256 = vld [vmem:[#allocation3 + $0x4a0] sm:$0xff]
    %v257 = vld [vmem:[#allocation3 + $0x4a8] sm:$0xff]
    %v258 = vld [vmem:[#allocation3 + $0x4b0] sm:$0xff]
    %v259 = vld [vmem:[#allocation3 + $0x4b8] sm:$0xff]
    %v260 = vld [vmem:[#allocation3 + $0x4c0] sm:$0xff]
    %v261 = vld [vmem:[#allocation3 + $0x4c8] sm:$0xff]
    %v262 = vld [vmem:[#allocation3 + $0x4d0] sm:$0xff]
    %v263 = vld [vmem:[#allocation3 + $0x4d8] sm:$0xff]
    %v264 = vld [vmem:[#allocation3 + $0x4e0] sm:$0xff]
    %v265 = vld [vmem:[#allocation3 + $0x4e8] sm:$0xff]
    %v266 = vld [vmem:[#allocation3 + $0x4f0] sm:$0xff]
    %v267 = vld [vmem:[#allocation3 + $0x4f8] sm:$0xff]
    %v268 = vld [vmem:[#allocation3 + $0x500] sm:$0xff]
    %v269 = vld [vmem:[#allocation3 + $0x508] sm:$0xff]
    %v270 = vld [vmem:[#allocation3 + $0x510] sm:$0xff]
    %v271 = vld [vmem:[#allocation3 + $0x518] sm:$0xff]
    %v272 = vld [vmem:[#allocation3 + $0x520] sm:$0xff]
    %v273 = vld [vmem:[#allocation3 + $0x528] sm:$0xff]
    %v274 = vld [vmem:[#allocation3 + $0x530] sm:$0xff]
    %v275 = vld [vmem:[#allocation3 + $0x538] sm:$0xff]
    %v276 = vld [vmem:[#allocation3 + $0x540] sm:$0xff]
    %v277 = vld [vmem:[#allocation3 + $0x548] sm:$0xff]
    %v278 = vld [vmem:[#allocation3 + $0x550] sm:$0xff]
    %v279 = vld [vmem:[#allocation3 + $0x558] sm:$0xff]
    %v280 = vld [vmem:[#allocation3 + $0x560] sm:$0xff]
    %v281 = vld [vmem:[#allocation3 + $0x568] sm:$0xff]
    %v282 = vld [vmem:[#allocation3 + $0x570] sm:$0xff]
    %v283 = vld [vmem:[#allocation3 + $0x578] sm:$0xff]
    %v284 = vld [vmem:[#allocation3 + $0x580] sm:$0xff]
    %v285 = vld [vmem:[#allocation3 + $0x588] sm:$0xff]
    %v286 = vld [vmem:[#allocation3 + $0x590] sm:$0xff]
    %v287 = vld [vmem:[#allocation3 + $0x598] sm:$0xff]
    %v288 = vld [vmem:[#allocation3 + $0x5a0] sm:$0xff]
    %v289 = vld [vmem:[#allocation3 + $0x5a8] sm:$0xff]
    %v290 = vld [vmem:[#allocation3 + $0x5b0] sm:$0xff]
    %v291 = vld [vmem:[#allocation3 + $0x5b8] sm:$0xff]
    %v292 = vld [vmem:[#allocation3 + $0x5c0] sm:$0xff]
    %v293 = vld [vmem:[#allocation3 + $0x5c8] sm:$0xff]
    %v294 = vld [vmem:[#allocation3 + $0x5d0] sm:$0xff]
    %v295 = vld [vmem:[#allocation3 + $0x5d8] sm:$0xff]
    %v296 = vld [vmem:[#allocation3 + $0x5e0] sm:$0xff]
    %v297 = vld [vmem:[#allocation3 + $0x5e8] sm:$0xff]
    %v298 = vld [vmem:[#allocation3 + $0x5f0] sm:$0xff]
    %v299 = vld [vmem:[#allocation3 + $0x5f8] sm:$0xff]
    %v300 = vld [vmem:[#allocation3 + $0x600] sm:$0xff]
    %v301 = vld [vmem:[#allocation3 + $0x608] sm:$0xff]
    %v302 = vld [vmem:[#allocation3 + $0x610] sm:$0xff]
    %v303 = vld [vmem:[#allocation3 + $0x618] sm:$0xff]
    %v304 = vld [vmem:[%s2] sm:$0xf]
    %v306 = vlaneseq
    %v307 = vshrl.u32 %v306, 7
    %v308 = vsub.s32 0, %v307
    %v309 = vrot.slane %v304, %v308
    %v310 = vlaneseq
    %v311 = vshrl.u32 %v310, 7
    %v312 = vsub.s32 1, %v311
    %v313 = vrot.slane %v304, %v312
    %v314 = vlaneseq
    %v315 = vshrl.u32 %v314, 7
    %v316 = vsub.s32 2, %v315
    %v317 = vrot.slane %v304, %v316
    %v318 = vlaneseq
    %v319 = vshrl.u32 %v318, 7
    %v320 = vsub.s32 3, %v319
    %v321 = vrot.slane %v304, %v320
    %v522 = vunpack.c.l.b16 %v108
    %v523 = vunpack.c.h.b16 %v108
    %v524 = vunpack.c.l.b16 %v109
    %v525 = vunpack.c.h.b16 %v109
    %v526 = vunpack.c.l.b16 %v110
    %v527 = vunpack.c.h.b16 %v110
    %v528 = vunpack.c.l.b16 %v111
    %v529 = vunpack.c.h.b16 %v111
    %v530 = vunpack.c.l.b16 %v112
    %v531 = vunpack.c.h.b16 %v112
    %v532 = vunpack.c.l.b16 %v113
    %v533 = vunpack.c.h.b16 %v113
    %v534 = vunpack.c.l.b16 %v114
    %v535 = vunpack.c.h.b16 %v114
    %v536 = vunpack.c.l.b16 %v115
    %v537 = vunpack.c.h.b16 %v115
    %v538 = vunpack.c.l.b16 %v116
    %v539 = vunpack.c.h.b16 %v116
    %v540 = vunpack.c.l.b16 %v117
    %v541 = vunpack.c.h.b16 %v117
    %v542 = vunpack.c.l.b16 %v118
    %v543 = vunpack.c.h.b16 %v118
    %v544 = vunpack.c.l.b16 %v119
    %v545 = vunpack.c.h.b16 %v119
    %v546 = vunpack.c.l.b16 %v120
    %v547 = vunpack.c.h.b16 %v120
    %v548 = vunpack.c.l.b16 %v121
    %v549 = vunpack.c.h.b16 %v121
    %v550 = vunpack.c.l.b16 %v122
    %v551 = vunpack.c.h.b16 %v122
    %v552 = vunpack.c.l.b16 %v123
    %v553 = vunpack.c.h.b16 %v123
    %v554 = vunpack.c.l.b16 %v124
    %v555 = vunpack.c.h.b16 %v124
    %v556 = vunpack.c.l.b16 %v125
    %v557 = vunpack.c.h.b16 %v125
    %v558 = vunpack.c.l.b16 %v126
    %v559 = vunpack.c.h.b16 %v126
    %v560 = vunpack.c.l.b16 %v127
    %v561 = vunpack.c.h.b16 %v127
    %v562 = vunpack.c.l.b16 %v128
    %v563 = vunpack.c.h.b16 %v128
    %v564 = vunpack.c.l.b16 %v129
    %v565 = vunpack.c.h.b16 %v129
    %v566 = vunpack.c.l.b16 %v130
    %v567 = vunpack.c.h.b16 %v130
    %v568 = vunpack.c.l.b16 %v131
    %v569 = vunpack.c.h.b16 %v131
    %v570 = vunpack.c.l.b16 %v132
    %v571 = vunpack.c.h.b16 %v132
    %v572 = vunpack.c.l.b16 %v133
    %v573 = vunpack.c.h.b16 %v133
    %v574 = vunpack.c.l.b16 %v134
    %v575 = vunpack.c.h.b16 %v134
    %v576 = vunpack.c.l.b16 %v135
    %v577 = vunpack.c.h.b16 %v135
    %v578 = vunpack.c.l.b16 %v136
    %v579 = vunpack.c.h.b16 %v136
    %v580 = vunpack.c.l.b16 %v137
    %v581 = vunpack.c.h.b16 %v137
    %v582 = vunpack.c.l.b16 %v138
    %v583 = vunpack.c.h.b16 %v138
    %v584 = vunpack.c.l.b16 %v139
    %v585 = vunpack.c.h.b16 %v139
    %v586 = vunpack.c.l.b16 %v140
    %v587 = vunpack.c.h.b16 %v140
    %v588 = vunpack.c.l.b16 %v141
    %v589 = vunpack.c.h.b16 %v141
    %v590 = vunpack.c.l.b16 %v142
    %v591 = vunpack.c.h.b16 %v142
    %v592 = vunpack.c.l.b16 %v143
    %v593 = vunpack.c.h.b16 %v143
    %v594 = vunpack.c.l.b16 %v144
    %v595 = vunpack.c.h.b16 %v144
    %v596 = vunpack.c.l.b16 %v145
    %v597 = vunpack.c.h.b16 %v145
    %v598 = vunpack.c.l.b16 %v146
    %v599 = vunpack.c.h.b16 %v146
    %v600 = vunpack.c.l.b16 %v147
    %v601 = vunpack.c.h.b16 %v147
    %v602 = vunpack.c.l.b16 %v148
    %v603 = vunpack.c.h.b16 %v148
    %v604 = vunpack.c.l.b16 %v149
    %v605 = vunpack.c.h.b16 %v149
    %v606 = vunpack.c.l.b16 %v150
    %v607 = vunpack.c.h.b16 %v150
    %v608 = vunpack.c.l.b16 %v151
    %v609 = vunpack.c.h.b16 %v151
    %v610 = vunpack.c.l.b16 %v152
    %v611 = vunpack.c.h.b16 %v152
    %v612 = vunpack.c.l.b16 %v153
    %v613 = vunpack.c.h.b16 %v153
    %v614 = vunpack.c.l.b16 %v154
    %v615 = vunpack.c.h.b16 %v154
    %v616 = vunpack.c.l.b16 %v155
    %v617 = vunpack.c.h.b16 %v155
    %v618 = vunpack.c.l.b16 %v156
    %v619 = vunpack.c.h.b16 %v156
    %v620 = vunpack.c.l.b16 %v157
    %v621 = vunpack.c.h.b16 %v157
    %v622 = vunpack.c.l.b16 %v158
    %v623 = vunpack.c.h.b16 %v158
    %v624 = vunpack.c.l.b16 %v159
    %v625 = vunpack.c.h.b16 %v159
    %v626 = vunpack.c.l.b16 %v160
    %v627 = vunpack.c.h.b16 %v160
    %v628 = vunpack.c.l.b16 %v161
    %v629 = vunpack.c.h.b16 %v161
    %v630 = vunpack.c.l.b16 %v162
    %v631 = vunpack.c.h.b16 %v162
    %v632 = vunpack.c.l.b16 %v163
    %v633 = vunpack.c.h.b16 %v163
    %v634 = vunpack.c.l.b16 %v164
    %v635 = vunpack.c.h.b16 %v164
    %v636 = vunpack.c.l.b16 %v165
    %v637 = vunpack.c.h.b16 %v165
    %v638 = vunpack.c.l.b16 %v166
    %v639 = vunpack.c.h.b16 %v166
    %v640 = vunpack.c.l.b16 %v167
    %v641 = vunpack.c.h.b16 %v167
    %v642 = vunpack.c.l.b16 %v168
    %v643 = vunpack.c.h.b16 %v168
    %v644 = vunpack.c.l.b16 %v169
    %v645 = vunpack.c.h.b16 %v169
    %v646 = vunpack.c.l.b16 %v170
    %v647 = vunpack.c.h.b16 %v170
    %v648 = vunpack.c.l.b16 %v171
    %v649 = vunpack.c.h.b16 %v171
    %v650 = vunpack.c.l.b16 %v172
    %v651 = vunpack.c.h.b16 %v172
    %v652 = vunpack.c.l.b16 %v173
    %v653 = vunpack.c.h.b16 %v173
    %v654 = vunpack.c.l.b16 %v174
    %v655 = vunpack.c.h.b16 %v174
    %v656 = vunpack.c.l.b16 %v175
    %v657 = vunpack.c.h.b16 %v175
    %v658 = vunpack.c.l.b16 %v176
    %v659 = vunpack.c.h.b16 %v176
    %v660 = vunpack.c.l.b16 %v177
    %v661 = vunpack.c.h.b16 %v177
    %v662 = vunpack.c.l.b16 %v178
    %v663 = vunpack.c.h.b16 %v178
    %v664 = vunpack.c.l.b16 %v179
    %v665 = vunpack.c.h.b16 %v179
    %v666 = vunpack.c.l.b16 %v180
    %v667 = vunpack.c.h.b16 %v180
    %v668 = vunpack.c.l.b16 %v181
    %v669 = vunpack.c.h.b16 %v181
    %v670 = vunpack.c.l.b16 %v182
    %v671 = vunpack.c.h.b16 %v182
    %v672 = vunpack.c.l.b16 %v183
    %v673 = vunpack.c.h.b16 %v183
    %v674 = vunpack.c.l.b16 %v184
    %v675 = vunpack.c.h.b16 %v184
    %v676 = vunpack.c.l.b16 %v185
    %v677 = vunpack.c.h.b16 %v185
    %v678 = vunpack.c.l.b16 %v186
    %v679 = vunpack.c.h.b16 %v186
    %v680 = vunpack.c.l.b16 %v187
    %v681 = vunpack.c.h.b16 %v187
    %v682 = vunpack.c.l.b16 %v188
    %v683 = vunpack.c.h.b16 %v188
    %v684 = vunpack.c.l.b16 %v189
    %v685 = vunpack.c.h.b16 %v189
    %v686 = vunpack.c.l.b16 %v190
    %v687 = vunpack.c.h.b16 %v190
    %v688 = vunpack.c.l.b16 %v191
    %v689 = vunpack.c.h.b16 %v191
    %v690 = vunpack.c.l.b16 %v192
    %v691 = vunpack.c.h.b16 %v192
    %v692 = vunpack.c.l.b16 %v193
    %v693 = vunpack.c.h.b16 %v193
    %v694 = vunpack.c.l.b16 %v194
    %v695 = vunpack.c.h.b16 %v194
    %v696 = vunpack.c.l.b16 %v195
    %v697 = vunpack.c.h.b16 %v195
    %v698 = vunpack.c.l.b16 %v196
    %v699 = vunpack.c.h.b16 %v196
    %v700 = vunpack.c.l.b16 %v197
    %v701 = vunpack.c.h.b16 %v197
    %v702 = vunpack.c.l.b16 %v198
    %v703 = vunpack.c.h.b16 %v198
    %v704 = vunpack.c.l.b16 %v199
    %v705 = vunpack.c.h.b16 %v199
    %v706 = vunpack.c.l.b16 %v200
    %v707 = vunpack.c.h.b16 %v200
    %v708 = vunpack.c.l.b16 %v201
    %v709 = vunpack.c.h.b16 %v201
    %v710 = vunpack.c.l.b16 %v202
    %v711 = vunpack.c.h.b16 %v202
    %v712 = vunpack.c.l.b16 %v203
    %v713 = vunpack.c.h.b16 %v203
    %v714 = vunpack.c.l.b16 %v204
    %v715 = vunpack.c.h.b16 %v204
    %v716 = vunpack.c.l.b16 %v205
    %v717 = vunpack.c.h.b16 %v205
    %v718 = vunpack.c.l.b16 %v206
    %v719 = vunpack.c.h.b16 %v206
    %v720 = vunpack.c.l.b16 %v207
    %v721 = vunpack.c.h.b16 %v207
    %v722 = vunpack.c.l.b16 %v208
    %v723 = vunpack.c.h.b16 %v208
    %v724 = vunpack.c.l.b16 %v209
    %v725 = vunpack.c.h.b16 %v209
    %v726 = vunpack.c.l.b16 %v210
    %v727 = vunpack.c.h.b16 %v210
    %v728 = vunpack.c.l.b16 %v211
    %v729 = vunpack.c.h.b16 %v211
    %v730 = vunpack.c.l.b16 %v212
    %v731 = vunpack.c.h.b16 %v212
    %v732 = vunpack.c.l.b16 %v213
    %v733 = vunpack.c.h.b16 %v213
    %v734 = vunpack.c.l.b16 %v214
    %v735 = vunpack.c.h.b16 %v214
    %v736 = vunpack.c.l.b16 %v215
    %v737 = vunpack.c.h.b16 %v215
    %v738 = vunpack.c.l.b16 %v216
    %v739 = vunpack.c.h.b16 %v216
    %v740 = vunpack.c.l.b16 %v217
    %v741 = vunpack.c.h.b16 %v217
    %v742 = vunpack.c.l.b16 %v218
    %v743 = vunpack.c.h.b16 %v218
    %v744 = vunpack.c.l.b16 %v219
    %v745 = vunpack.c.h.b16 %v219
    %v746 = vunpack.c.l.b16 %v220
    %v747 = vunpack.c.h.b16 %v220
    %v748 = vunpack.c.l.b16 %v221
    %v749 = vunpack.c.h.b16 %v221
    %v750 = vunpack.c.l.b16 %v222
    %v751 = vunpack.c.h.b16 %v222
    %v752 = vunpack.c.l.b16 %v223
    %v753 = vunpack.c.h.b16 %v223
    %v754 = vunpack.c.l.b16 %v224
    %v755 = vunpack.c.h.b16 %v224
    %v756 = vunpack.c.l.b16 %v225
    %v757 = vunpack.c.h.b16 %v225
    %v758 = vunpack.c.l.b16 %v226
    %v759 = vunpack.c.h.b16 %v226
    %v760 = vunpack.c.l.b16 %v227
    %v761 = vunpack.c.h.b16 %v227
    %v762 = vunpack.c.l.b16 %v228
    %v763 = vunpack.c.h.b16 %v228
    %v764 = vunpack.c.l.b16 %v229
    %v765 = vunpack.c.h.b16 %v229
    %v766 = vunpack.c.l.b16 %v230
    %v767 = vunpack.c.h.b16 %v230
    %v768 = vunpack.c.l.b16 %v231
    %v769 = vunpack.c.h.b16 %v231
    %v770 = vunpack.c.l.b16 %v232
    %v771 = vunpack.c.h.b16 %v232
    %v772 = vunpack.c.l.b16 %v233
    %v773 = vunpack.c.h.b16 %v233
    %v774 = vunpack.c.l.b16 %v234
    %v775 = vunpack.c.h.b16 %v234
    %v776 = vunpack.c.l.b16 %v235
    %v777 = vunpack.c.h.b16 %v235
    %v778 = vunpack.c.l.b16 %v236
    %v779 = vunpack.c.h.b16 %v236
    %v780 = vunpack.c.l.b16 %v237
    %v781 = vunpack.c.h.b16 %v237
    %v782 = vunpack.c.l.b16 %v238
    %v783 = vunpack.c.h.b16 %v238
    %v784 = vunpack.c.l.b16 %v239
    %v785 = vunpack.c.h.b16 %v239
    %v786 = vunpack.c.l.b16 %v240
    %v787 = vunpack.c.h.b16 %v240
    %v788 = vunpack.c.l.b16 %v241
    %v789 = vunpack.c.h.b16 %v241
    %v790 = vunpack.c.l.b16 %v242
    %v791 = vunpack.c.h.b16 %v242
    %v792 = vunpack.c.l.b16 %v243
    %v793 = vunpack.c.h.b16 %v243
    %v794 = vunpack.c.l.b16 %v244
    %v795 = vunpack.c.h.b16 %v244
    %v796 = vunpack.c.l.b16 %v245
    %v797 = vunpack.c.h.b16 %v245
    %v798 = vunpack.c.l.b16 %v246
    %v799 = vunpack.c.h.b16 %v246
    %v800 = vunpack.c.l.b16 %v247
    %v801 = vunpack.c.h.b16 %v247
    %v802 = vunpack.c.l.b16 %v248
    %v803 = vunpack.c.h.b16 %v248
    %v804 = vunpack.c.l.b16 %v249
    %v805 = vunpack.c.h.b16 %v249
    %v806 = vunpack.c.l.b16 %v250
    %v807 = vunpack.c.h.b16 %v250
    %v808 = vunpack.c.l.b16 %v251
    %v809 = vunpack.c.h.b16 %v251
    %v810 = vunpack.c.l.b16 %v252
    %v811 = vunpack.c.h.b16 %v252
    %v812 = vunpack.c.l.b16 %v253
    %v813 = vunpack.c.h.b16 %v253
    %v814 = vunpack.c.l.b16 %v254
    %v815 = vunpack.c.h.b16 %v254
    %v816 = vunpack.c.l.b16 %v255
    %v817 = vunpack.c.h.b16 %v255
    %v818 = vunpack.c.l.b16 %v256
    %v819 = vunpack.c.h.b16 %v256
    %v820 = vunpack.c.l.b16 %v257
    %v821 = vunpack.c.h.b16 %v257
    %v822 = vunpack.c.l.b16 %v258
    %v823 = vunpack.c.h.b16 %v258
    %v824 = vunpack.c.l.b16 %v259
    %v825 = vunpack.c.h.b16 %v259
    %v826 = vunpack.c.l.b16 %v260
    %v827 = vunpack.c.h.b16 %v260
    %v828 = vunpack.c.l.b16 %v261
    %v829 = vunpack.c.h.b16 %v261
    %v830 = vunpack.c.l.b16 %v262
    %v831 = vunpack.c.h.b16 %v262
    %v832 = vunpack.c.l.b16 %v263
    %v833 = vunpack.c.h.b16 %v263
    %v834 = vunpack.c.l.b16 %v264
    %v835 = vunpack.c.h.b16 %v264
    %v836 = vunpack.c.l.b16 %v265
    %v837 = vunpack.c.h.b16 %v265
    %v838 = vunpack.c.l.b16 %v266
    %v839 = vunpack.c.h.b16 %v266
    %v840 = vunpack.c.l.b16 %v267
    %v841 = vunpack.c.h.b16 %v267
    %v842 = vunpack.c.l.b16 %v268
    %v843 = vunpack.c.h.b16 %v268
    %v844 = vunpack.c.l.b16 %v269
    %v845 = vunpack.c.h.b16 %v269
    %v846 = vunpack.c.l.b16 %v270
    %v847 = vunpack.c.h.b16 %v270
    %v848 = vunpack.c.l.b16 %v271
    %v849 = vunpack.c.h.b16 %v271
    %v850 = vunpack.c.l.b16 %v272
    %v851 = vunpack.c.h.b16 %v272
    %v852 = vunpack.c.l.b16 %v273
    %v853 = vunpack.c.h.b16 %v273
    %v854 = vunpack.c.l.b16 %v274
    %v855 = vunpack.c.h.b16 %v274
    %v856 = vunpack.c.l.b16 %v275
    %v857 = vunpack.c.h.b16 %v275
    %v858 = vunpack.c.l.b16 %v276
    %v859 = vunpack.c.h.b16 %v276
    %v860 = vunpack.c.l.b16 %v277
    %v861 = vunpack.c.h.b16 %v277
    %v862 = vunpack.c.l.b16 %v278
    %v863 = vunpack.c.h.b16 %v278
    %v864 = vunpack.c.l.b16 %v279
    %v865 = vunpack.c.h.b16 %v279
    %v866 = vunpack.c.l.b16 %v280
    %v867 = vunpack.c.h.b16 %v280
    %v868 = vunpack.c.l.b16 %v281
    %v869 = vunpack.c.h.b16 %v281
    %v870 = vunpack.c.l.b16 %v282
    %v871 = vunpack.c.h.b16 %v282
    %v872 = vunpack.c.l.b16 %v283
    %v873 = vunpack.c.h.b16 %v283
    %v874 = vunpack.c.l.b16 %v284
    %v875 = vunpack.c.h.b16 %v284
    %v876 = vunpack.c.l.b16 %v285
    %v877 = vunpack.c.h.b16 %v285
    %v878 = vunpack.c.l.b16 %v286
    %v879 = vunpack.c.h.b16 %v286
    %v880 = vunpack.c.l.b16 %v287
    %v881 = vunpack.c.h.b16 %v287
    %v882 = vunpack.c.l.b16 %v288
    %v883 = vunpack.c.h.b16 %v288
    %v884 = vunpack.c.l.b16 %v289
    %v885 = vunpack.c.h.b16 %v289
    %v886 = vunpack.c.l.b16 %v290
    %v887 = vunpack.c.h.b16 %v290
    %v888 = vunpack.c.l.b16 %v291
    %v889 = vunpack.c.h.b16 %v291
    %v890 = vunpack.c.l.b16 %v292
    %v891 = vunpack.c.h.b16 %v292
    %v892 = vunpack.c.l.b16 %v293
    %v893 = vunpack.c.h.b16 %v293
    %v894 = vunpack.c.l.b16 %v294
    %v895 = vunpack.c.h.b16 %v294
    %v896 = vunpack.c.l.b16 %v295
    %v897 = vunpack.c.h.b16 %v295
    %v898 = vunpack.c.l.b16 %v296
    %v899 = vunpack.c.h.b16 %v296
    %v900 = vunpack.c.l.b16 %v297
    %v901 = vunpack.c.h.b16 %v297
    %v902 = vunpack.c.l.b16 %v298
    %v903 = vunpack.c.h.b16 %v298
    %v904 = vunpack.c.l.b16 %v299
    %v905 = vunpack.c.h.b16 %v299
    %v906 = vunpack.c.l.b16 %v300
    %v907 = vunpack.c.h.b16 %v300
    %v908 = vunpack.c.l.b16 %v301
    %v909 = vunpack.c.h.b16 %v301
    %v910 = vunpack.c.l.b16 %v302
    %v911 = vunpack.c.h.b16 %v302
    %v912 = vunpack.c.l.b16 %v303
    %v913 = vunpack.c.h.b16 %v303
    %v914 = vpack.c.b16 %v526, %v522
    %v915 = vpack.c.b16 %v527, %v523
    %v916 = vpack.c.b16 %v528, %v524
    %v917 = vpack.c.b16 %v529, %v525
    %v918 = vpack.c.b16 %v534, %v530
    %v919 = vpack.c.b16 %v535, %v531
    %v920 = vpack.c.b16 %v536, %v532
    %v921 = vpack.c.b16 %v537, %v533
    %v922 = vpack.c.b16 %v542, %v538
    %v923 = vpack.c.b16 %v543, %v539
    %v924 = vpack.c.b16 %v544, %v540
    %v925 = vpack.c.b16 %v545, %v541
    %v926 = vpack.c.b16 %v550, %v546
    %v927 = vpack.c.b16 %v551, %v547
    %v928 = vpack.c.b16 %v552, %v548
    %v929 = vpack.c.b16 %v553, %v549
    %v930 = vpack.c.b16 %v558, %v554
    %v931 = vpack.c.b16 %v559, %v555
    %v932 = vpack.c.b16 %v560, %v556
    %v933 = vpack.c.b16 %v561, %v557
    %v934 = vpack.c.b16 %v566, %v562
    %v935 = vpack.c.b16 %v567, %v563
    %v936 = vpack.c.b16 %v568, %v564
    %v937 = vpack.c.b16 %v569, %v565
    %v938 = vpack.c.b16 %v574, %v570
    %v939 = vpack.c.b16 %v575, %v571
    %v940 = vpack.c.b16 %v576, %v572
    %v941 = vpack.c.b16 %v577, %v573
    %v942 = vpack.c.b16 %v582, %v578
    %v943 = vpack.c.b16 %v583, %v579
    %v944 = vpack.c.b16 %v584, %v580
    %v945 = vpack.c.b16 %v585, %v581
    %v946 = vpack.c.b16 %v590, %v586
    %v947 = vpack.c.b16 %v591, %v587
    %v948 = vpack.c.b16 %v592, %v588
    %v949 = vpack.c.b16 %v593, %v589
    %v950 = vpack.c.b16 %v598, %v594
    %v951 = vpack.c.b16 %v599, %v595
    %v952 = vpack.c.b16 %v600, %v596
    %v953 = vpack.c.b16 %v601, %v597
    %v954 = vpack.c.b16 %v606, %v602
    %v955 = vpack.c.b16 %v607, %v603
    %v956 = vpack.c.b16 %v608, %v604
    %v957 = vpack.c.b16 %v609, %v605
    %v958 = vpack.c.b16 %v614, %v610
    %v959 = vpack.c.b16 %v615, %v611
    %v960 = vpack.c.b16 %v616, %v612
    %v961 = vpack.c.b16 %v617, %v613
    %v962 = vpack.c.b16 %v622, %v618
    %v963 = vpack.c.b16 %v623, %v619
    %v964 = vpack.c.b16 %v624, %v620
    %v965 = vpack.c.b16 %v625, %v621
    %v966 = vpack.c.b16 %v630, %v626
    %v967 = vpack.c.b16 %v631, %v627
    %v968 = vpack.c.b16 %v632, %v628
    %v969 = vpack.c.b16 %v633, %v629
    %v970 = vpack.c.b16 %v638, %v634
    %v971 = vpack.c.b16 %v639, %v635
    %v972 = vpack.c.b16 %v640, %v636
    %v973 = vpack.c.b16 %v641, %v637
    %v974 = vpack.c.b16 %v646, %v642
    %v975 = vpack.c.b16 %v647, %v643
    %v976 = vpack.c.b16 %v648, %v644
    %v977 = vpack.c.b16 %v649, %v645
    %v978 = vpack.c.b16 %v654, %v650
    %v979 = vpack.c.b16 %v655, %v651
    %v980 = vpack.c.b16 %v656, %v652
    %v981 = vpack.c.b16 %v657, %v653
    %v982 = vpack.c.b16 %v662, %v658
    %v983 = vpack.c.b16 %v663, %v659
    %v984 = vpack.c.b16 %v664, %v660
    %v985 = vpack.c.b16 %v665, %v661
    %v986 = vpack.c.b16 %v670, %v666
    %v987 = vpack.c.b16 %v671, %v667
    %v988 = vpack.c.b16 %v672, %v668
    %v989 = vpack.c.b16 %v673, %v669
    %v990 = vpack.c.b16 %v678, %v674
    %v991 = vpack.c.b16 %v679, %v675
    %v992 = vpack.c.b16 %v680, %v676
    %v993 = vpack.c.b16 %v681, %v677
    %v994 = vpack.c.b16 %v686, %v682
    %v995 = vpack.c.b16 %v687, %v683
    %v996 = vpack.c.b16 %v688, %v684
    %v997 = vpack.c.b16 %v689, %v685
    %v998 = vpack.c.b16 %v694, %v690
    %v999 = vpack.c.b16 %v695, %v691
    %v1000 = vpack.c.b16 %v696, %v692
    %v1001 = vpack.c.b16 %v697, %v693
    %v1002 = vpack.c.b16 %v702, %v698
    %v1003 = vpack.c.b16 %v703, %v699
    %v1004 = vpack.c.b16 %v704, %v700
    %v1005 = vpack.c.b16 %v705, %v701
    %v1006 = vpack.c.b16 %v710, %v706
    %v1007 = vpack.c.b16 %v711, %v707
    %v1008 = vpack.c.b16 %v712, %v708
    %v1009 = vpack.c.b16 %v713, %v709
    %v1010 = vpack.c.b16 %v718, %v714
    %v1011 = vpack.c.b16 %v719, %v715
    %v1012 = vpack.c.b16 %v720, %v716
    %v1013 = vpack.c.b16 %v721, %v717
    %v1014 = vpack.c.b16 %v726, %v722
    %v1015 = vpack.c.b16 %v727, %v723
    %v1016 = vpack.c.b16 %v728, %v724
    %v1017 = vpack.c.b16 %v729, %v725
    %v1018 = vpack.c.b16 %v734, %v730
    %v1019 = vpack.c.b16 %v735, %v731
    %v1020 = vpack.c.b16 %v736, %v732
    %v1021 = vpack.c.b16 %v737, %v733
    %v1022 = vpack.c.b16 %v742, %v738
    %v1023 = vpack.c.b16 %v743, %v739
    %v1024 = vpack.c.b16 %v744, %v740
    %v1025 = vpack.c.b16 %v745, %v741
    %v1026 = vpack.c.b16 %v750, %v746
    %v1027 = vpack.c.b16 %v751, %v747
    %v1028 = vpack.c.b16 %v752, %v748
    %v1029 = vpack.c.b16 %v753, %v749
    %v1030 = vpack.c.b16 %v758, %v754
    %v1031 = vpack.c.b16 %v759, %v755
    %v1032 = vpack.c.b16 %v760, %v756
    %v1033 = vpack.c.b16 %v761, %v757
    %v1034 = vpack.c.b16 %v766, %v762
    %v1035 = vpack.c.b16 %v767, %v763
    %v1036 = vpack.c.b16 %v768, %v764
    %v1037 = vpack.c.b16 %v769, %v765
    %v1038 = vpack.c.b16 %v774, %v770
    %v1039 = vpack.c.b16 %v775, %v771
    %v1040 = vpack.c.b16 %v776, %v772
    %v1041 = vpack.c.b16 %v777, %v773
    %v1042 = vpack.c.b16 %v782, %v778
    %v1043 = vpack.c.b16 %v783, %v779
    %v1044 = vpack.c.b16 %v784, %v780
    %v1045 = vpack.c.b16 %v785, %v781
    %v1046 = vpack.c.b16 %v790, %v786
    %v1047 = vpack.c.b16 %v791, %v787
    %v1048 = vpack.c.b16 %v792, %v788
    %v1049 = vpack.c.b16 %v793, %v789
    %v1050 = vpack.c.b16 %v798, %v794
    %v1051 = vpack.c.b16 %v799, %v795
    %v1052 = vpack.c.b16 %v800, %v796
    %v1053 = vpack.c.b16 %v801, %v797
    %v1054 = vpack.c.b16 %v806, %v802
    %v1055 = vpack.c.b16 %v807, %v803
    %v1056 = vpack.c.b16 %v808, %v804
    %v1057 = vpack.c.b16 %v809, %v805
    %v1058 = vpack.c.b16 %v814, %v810
    %v1059 = vpack.c.b16 %v815, %v811
    %v1060 = vpack.c.b16 %v816, %v812
    %v1061 = vpack.c.b16 %v817, %v813
    %v1062 = vpack.c.b16 %v822, %v818
    %v1063 = vpack.c.b16 %v823, %v819
    %v1064 = vpack.c.b16 %v824, %v820
    %v1065 = vpack.c.b16 %v825, %v821
    %v1066 = vpack.c.b16 %v830, %v826
    %v1067 = vpack.c.b16 %v831, %v827
    %v1068 = vpack.c.b16 %v832, %v828
    %v1069 = vpack.c.b16 %v833, %v829
    %v1070 = vpack.c.b16 %v838, %v834
    %v1071 = vpack.c.b16 %v839, %v835
    %v1072 = vpack.c.b16 %v840, %v836
    %v1073 = vpack.c.b16 %v841, %v837
    %v1074 = vpack.c.b16 %v846, %v842
    %v1075 = vpack.c.b16 %v847, %v843
    %v1076 = vpack.c.b16 %v848, %v844
    %v1077 = vpack.c.b16 %v849, %v845
    %v1078 = vpack.c.b16 %v854, %v850
    %v1079 = vpack.c.b16 %v855, %v851
    %v1080 = vpack.c.b16 %v856, %v852
    %v1081 = vpack.c.b16 %v857, %v853
    %v1082 = vpack.c.b16 %v862, %v858
    %v1083 = vpack.c.b16 %v863, %v859
    %v1084 = vpack.c.b16 %v864, %v860
    %v1085 = vpack.c.b16 %v865, %v861
    %v1086 = vpack.c.b16 %v870, %v866
    %v1087 = vpack.c.b16 %v871, %v867
    %v1088 = vpack.c.b16 %v872, %v868
    %v1089 = vpack.c.b16 %v873, %v869
    %v1090 = vpack.c.b16 %v878, %v874
    %v1091 = vpack.c.b16 %v879, %v875
    %v1092 = vpack.c.b16 %v880, %v876
    %v1093 = vpack.c.b16 %v881, %v877
    %v1094 = vpack.c.b16 %v886, %v882
    %v1095 = vpack.c.b16 %v887, %v883
    %v1096 = vpack.c.b16 %v888, %v884
    %v1097 = vpack.c.b16 %v889, %v885
    %v1098 = vpack.c.b16 %v894, %v890
    %v1099 = vpack.c.b16 %v895, %v891
    %v1100 = vpack.c.b16 %v896, %v892
    %v1101 = vpack.c.b16 %v897, %v893
    %v1102 = vpack.c.b16 %v902, %v898
    %v1103 = vpack.c.b16 %v903, %v899
    %v1104 = vpack.c.b16 %v904, %v900
    %v1105 = vpack.c.b16 %v905, %v901
    %v1106 = vpack.c.b16 %v910, %v906
    %v1107 = vpack.c.b16 %v911, %v907
    %v1108 = vpack.c.b16 %v912, %v908
    %v1109 = vpack.c.b16 %v913, %v909
    %vm1306 = vcmask 130048
    %v1308 = vsel %vm1306, %v107, 0
    %1310 = vmatprep.subr.bf16.mxu0 %v915
    %1311 = vmatpush1.bf16.msra.mxu0 %v914
    %1312 = vmatprep.subr.bf16.mxu0 %v919
    %1313 = vmatpush1.bf16.msra.mxu0 %v918
    %1314 = vmatprep.subr.bf16.mxu0 %v923
    %1315 = vmatpush1.bf16.msra.mxu0 %v922
    %1316 = vmatprep.subr.bf16.mxu0 %v927
    %1317 = vmatpush1.bf16.msra.mxu0 %v926
    %1318 = vmatprep.subr.bf16.mxu0 %v931
    %1319 = vmatpush1.bf16.msra.mxu0 %v930
    %1320 = vmatprep.subr.bf16.mxu0 %v935
    %1321 = vmatpush1.bf16.msra.mxu0 %v934
    %1322 = vmatprep.subr.bf16.mxu0 %v939
    %1323 = vmatpush1.bf16.msra.mxu0 %v938
    %1324 = vmatprep.subr.bf16.mxu0 %v943
    %1325 = vmatpush1.bf16.msra.mxu0 %v942
    %1326 = vmatprep.subr.bf16.mxu0 %v947
    %1327 = vmatpush1.bf16.msra.mxu0 %v946
    %1328 = vmatprep.subr.bf16.mxu0 %v951
    %1329 = vmatpush1.bf16.msra.mxu0 %v950
    %1330 = vmatprep.subr.bf16.mxu0 %v955
    %1331 = vmatpush1.bf16.msra.mxu0 %v954
    %1332 = vmatprep.subr.bf16.mxu0 %v959
    %1333 = vmatpush1.bf16.msra.mxu0 %v958
    %1334 = vmatprep.subr.bf16.mxu0 %v963
    %1335 = vmatpush1.bf16.msra.mxu0 %v962
    %1336 = vmatprep.subr.bf16.mxu0 %v967
    %1337 = vmatpush1.bf16.msra.mxu0 %v966
    %1338 = vmatprep.subr.bf16.mxu0 %v971
    %1339 = vmatpush1.bf16.msra.mxu0 %v970
    %1340 = vmatprep.subr.bf16.mxu0 %v975
    %1341 = vmatpush1.bf16.msra.mxu0 %v974
    %1342 = vmatprep.mubr.bf16.mxu0 %v102
    %1343 = vmatmul.mubr.bf16.gmra.mrb[0].mxu0 %v101
    %v1344 = vpop.f32.mrb[0].mxu0
    %v1345 = vadd.f32 %v309, %v1344
    %v1346 = vpop.f32.mrb[0].mxu0
    %v1347 = vadd.f32 %v313, %v1346
    %v1348 = vpop.f32.mrb[0].mxu0
    %v1349 = vpop.f32.mrb[0].mxu0
    %1350 = vdwg.mxu0
    %1351 = vmatprep.subr.bf16.mxu0 %v979
    %1352 = vmatpush1.bf16.msra.mxu0 %v978
    %1353 = vmatprep.subr.bf16.mxu0 %v983
    %1354 = vmatpush1.bf16.msra.mxu0 %v982
    %1355 = vmatprep.subr.bf16.mxu0 %v987
    %1356 = vmatpush1.bf16.msra.mxu0 %v986
    %1357 = vmatprep.subr.bf16.mxu0 %v991
    %1358 = vmatpush1.bf16.msra.mxu0 %v990
    %1359 = vmatprep.subr.bf16.mxu0 %v995
    %1360 = vmatpush1.bf16.msra.mxu0 %v994
    %1361 = vmatprep.subr.bf16.mxu0 %v999
    %1362 = vmatpush1.bf16.msra.mxu0 %v998
    %1363 = vmatprep.subr.bf16.mxu0 %v1003
    %1364 = vmatpush1.bf16.msra.mxu0 %v1002
    %1365 = vmatprep.subr.bf16.mxu0 %v1007
    %1366 = vmatpush1.bf16.msra.mxu0 %v1006
    %1367 = vmatprep.subr.bf16.mxu0 %v1011
    %1368 = vmatpush1.bf16.msra.mxu0 %v1010
    %1369 = vmatprep.subr.bf16.mxu0 %v1015
    %1370 = vmatpush1.bf16.msra.mxu0 %v1014
    %1371 = vmatprep.subr.bf16.mxu0 %v1019
    %1372 = vmatpush1.bf16.msra.mxu0 %v1018
    %1373 = vmatprep.subr.bf16.mxu0 %v1023
    %1374 = vmatpush1.bf16.msra.mxu0 %v1022
    %1375 = vmatprep.subr.bf16.mxu0 %v1027
    %1376 = vmatpush1.bf16.msra.mxu0 %v1026
    %1377 = vmatprep.subr.bf16.mxu0 %v1031
    %1378 = vmatpush1.bf16.msra.mxu0 %v1030
    %1379 = vmatprep.subr.bf16.mxu0 %v1035
    %1380 = vmatpush1.bf16.msra.mxu0 %v1034
    %1381 = vmatprep.subr.bf16.mxu0 %v1039
    %1382 = vmatpush1.bf16.msra.mxu0 %v1038
    %1383 = vmatprep.mubr.bf16.mxu0 %v104
    %1384 = vmatmul.mubr.bf16.gmra.mrb[0].mxu0 %v103
    %v1385 = vpop.f32.mrb[0].mxu0
    %v1386 = vadd.f32 %v1345, %v1385
    %v1387 = vpop.f32.mrb[0].mxu0
    %v1388 = vadd.f32 %v1347, %v1387
    %v1389 = vpop.f32.mrb[0].mxu0
    %v1390 = vpop.f32.mrb[0].mxu0
    %1391 = vdwg.mxu0
    %1392 = vmatprep.subr.bf16.mxu0 %v1043
    %1393 = vmatpush1.bf16.msra.mxu0 %v1042
    %1394 = vmatprep.subr.bf16.mxu0 %v1047
    %1395 = vmatpush1.bf16.msra.mxu0 %v1046
    %1396 = vmatprep.subr.bf16.mxu0 %v1051
    %1397 = vmatpush1.bf16.msra.mxu0 %v1050
    %1398 = vmatprep.subr.bf16.mxu0 %v1055
    %1399 = vmatpush1.bf16.msra.mxu0 %v1054
    %1400 = vmatprep.subr.bf16.mxu0 %v1059
    %1401 = vmatpush1.bf16.msra.mxu0 %v1058
    %1402 = vmatprep.subr.bf16.mxu0 %v1063
    %1403 = vmatpush1.bf16.msra.mxu0 %v1062
    %1404 = vmatprep.subr.bf16.mxu0 %v1067
    %1405 = vmatpush1.bf16.msra.mxu0 %v1066
    %1406 = vmatprep.subr.bf16.mxu0 %v1071
    %1407 = vmatpush1.bf16.msra.mxu0 %v1070
    %1408 = vmatprep.subr.bf16.mxu0 %v1075
    %1409 = vmatpush1.bf16.msra.mxu0 %v1074
    %1410 = vmatprep.subr.bf16.mxu0 %v1079
    %1411 = vmatpush1.bf16.msra.mxu0 %v1078
    %1412 = vmatprep.subr.bf16.mxu0 %v1083
    %1413 = vmatpush1.bf16.msra.mxu0 %v1082
    %1414 = vmatprep.subr.bf16.mxu0 %v1087
    %1415 = vmatpush1.bf16.msra.mxu0 %v1086
    %1416 = vmatprep.subr.bf16.mxu0 %v1091
    %1417 = vmatpush1.bf16.msra.mxu0 %v1090
    %1418 = vmatprep.subr.bf16.mxu0 %v1095
    %1419 = vmatpush1.bf16.msra.mxu0 %v1094
    %1420 = vmatprep.subr.bf16.mxu0 %v1099
    %1421 = vmatpush1.bf16.msra.mxu0 %v1098
    %1422 = vmatprep.subr.bf16.mxu0 %v1103
    %1423 = vmatpush1.bf16.msra.mxu0 %v1102
    %1424 = vmatprep.mubr.bf16.mxu0 %v106
    %1425 = vmatmul.mubr.bf16.gmra.mrb[0].mxu0 %v105
    %v1426 = vpop.f32.mrb[0].mxu0
    %v1427 = vadd.f32 %v1386, %v1426
    %v1428 = vpop.f32.mrb[0].mxu0
    %v1429 = vadd.f32 %v1388, %v1428
    %v1430 = vpop.f32.mrb[0].mxu0
    %v1431 = vpop.f32.mrb[0].mxu0
    %1432 = vdwg.mxu0
    %1433 = vmatprep.subr.bf16.mxu0 %v1107
    %1434 = vmatpush1.bf16.msra.mxu0 %v1106
    %1435 = vmatprep.subr.bf16.mxu0 0
    %1436 = vmatpush1.bf16.msra.mxu0 0
    %1437 = vmatprep.subr.bf16.mxu0 0
    %1438 = vmatpush1.bf16.msra.mxu0 0
    %1439 = vmatprep.subr.bf16.mxu0 0
    %1440 = vmatpush1.bf16.msra.mxu0 0
    %1441 = vmatprep.subr.bf16.mxu0 0
    %1442 = vmatpush1.bf16.msra.mxu0 0
    %1443 = vmatprep.subr.bf16.mxu0 0
    %1444 = vmatpush1.bf16.msra.mxu0 0
    %1445 = vmatprep.subr.bf16.mxu0 0
    %1446 = vmatpush1.bf16.msra.mxu0 0
    %1447 = vmatprep.subr.bf16.mxu0 0
    %1448 = vmatpush1.bf16.msra.mxu0 0
    %1449 = vmatprep.subr.bf16.mxu0 0
    %1450 = vmatpush1.bf16.msra.mxu0 0
    %1451 = vmatprep.subr.bf16.mxu0 0
    %1452 = vmatpush1.bf16.msra.mxu0 0
    %1453 = vmatprep.subr.bf16.mxu0 0
    %1454 = vmatpush1.bf16.msra.mxu0 0
    %1455 = vmatprep.subr.bf16.mxu0 0
    %1456 = vmatpush1.bf16.msra.mxu0 0
    %1457 = vmatprep.subr.bf16.mxu0 0
    %1458 = vmatpush1.bf16.msra.mxu0 0
    %1459 = vmatprep.subr.bf16.mxu0 0
    %1460 = vmatpush1.bf16.msra.mxu0 0
    %1461 = vmatprep.subr.bf16.mxu0 0
    %1462 = vmatpush1.bf16.msra.mxu0 0
    %1463 = vmatprep.subr.bf16.mxu0 0
    %1464 = vmatpush1.bf16.msra.mxu0 0
    %1465 = vmatprep.mubr.bf16.mxu0 0
    %1466 = vmatmul.mubr.bf16.gmra.mrb[0].mxu0 %v1308
    %v1467 = vpop.f32.mrb[0].mxu0
    %v1468 = vadd.f32 %v1427, %v1467
    %v1469 = vpop.f32.mrb[0].mxu0
    %v1470 = vadd.f32 %v1429, %v1469
    %v1471 = vpop.f32.mrb[0].mxu0
    %v1472 = vpop.f32.mrb[0].mxu0
    %1473 = vdwg.mxu0
    %1474 = vmatprep.subr.bf16.mxu0 %v917
    %1475 = vmatpush1.bf16.msra.mxu0 %v916
    %1476 = vmatprep.subr.bf16.mxu0 %v921
    %1477 = vmatpush1.bf16.msra.mxu0 %v920
    %1478 = vmatprep.subr.bf16.mxu0 %v925
    %1479 = vmatpush1.bf16.msra.mxu0 %v924
    %1480 = vmatprep.subr.bf16.mxu0 %v929
    %1481 = vmatpush1.bf16.msra.mxu0 %v928
    %1482 = vmatprep.subr.bf16.mxu0 %v933
    %1483 = vmatpush1.bf16.msra.mxu0 %v932
    %1484 = vmatprep.subr.bf16.mxu0 %v937
    %1485 = vmatpush1.bf16.msra.mxu0 %v936
    %1486 = vmatprep.subr.bf16.mxu0 %v941
    %1487 = vmatpush1.bf16.msra.mxu0 %v940
    %1488 = vmatprep.subr.bf16.mxu0 %v945
    %1489 = vmatpush1.bf16.msra.mxu0 %v944
    %1490 = vmatprep.subr.bf16.mxu0 %v949
    %1491 = vmatpush1.bf16.msra.mxu0 %v948
    %1492 = vmatprep.subr.bf16.mxu0 %v953
    %1493 = vmatpush1.bf16.msra.mxu0 %v952
    %1494 = vmatprep.subr.bf16.mxu0 %v957
    %1495 = vmatpush1.bf16.msra.mxu0 %v956
    %1496 = vmatprep.subr.bf16.mxu0 %v961
    %1497 = vmatpush1.bf16.msra.mxu0 %v960
    %1498 = vmatprep.subr.bf16.mxu0 %v965
    %1499 = vmatpush1.bf16.msra.mxu0 %v964
    %1500 = vmatprep.subr.bf16.mxu0 %v969
    %1501 = vmatpush1.bf16.msra.mxu0 %v968
    %1502 = vmatprep.subr.bf16.mxu0 %v973
    %1503 = vmatpush1.bf16.msra.mxu0 %v972
    %1504 = vmatprep.subr.bf16.mxu0 %v977
    %1505 = vmatpush1.bf16.msra.mxu0 %v976
    %1506 = vmatprep.mubr.bf16.mxu0 %v102
    %1507 = vmatmul.mubr.bf16.gmra.mrb[0].mxu0 %v101
    %v1508 = vpop.f32.mrb[0].mxu0
    %v1509 = vadd.f32 %v317, %v1508
    %v1510 = vpop.f32.mrb[0].mxu0
    %v1511 = vadd.f32 %v321, %v1510
    %v1512 = vpop.f32.mrb[0].mxu0
    %v1513 = vpop.f32.mrb[0].mxu0
    %1514 = vdwg.mxu0
    %1515 = vmatprep.subr.bf16.mxu0 %v981
    %1516 = vmatpush1.bf16.msra.mxu0 %v980
    %1517 = vmatprep.subr.bf16.mxu0 %v985
    %1518 = vmatpush1.bf16.msra.mxu0 %v984
    %1519 = vmatprep.subr.bf16.mxu0 %v989
    %1520 = vmatpush1.bf16.msra.mxu0 %v988
    %1521 = vmatprep.subr.bf16.mxu0 %v993
    %1522 = vmatpush1.bf16.msra.mxu0 %v992
    %1523 = vmatprep.subr.bf16.mxu0 %v997
    %1524 = vmatpush1.bf16.msra.mxu0 %v996
    %1525 = vmatprep.subr.bf16.mxu0 %v1001
    %1526 = vmatpush1.bf16.msra.mxu0 %v1000
    %1527 = vmatprep.subr.bf16.mxu0 %v1005
    %1528 = vmatpush1.bf16.msra.mxu0 %v1004
    %1529 = vmatprep.subr.bf16.mxu0 %v1009
    %1530 = vmatpush1.bf16.msra.mxu0 %v1008
    %1531 = vmatprep.subr.bf16.mxu0 %v1013
    %1532 = vmatpush1.bf16.msra.mxu0 %v1012
    %1533 = vmatprep.subr.bf16.mxu0 %v1017
    %1534 = vmatpush1.bf16.msra.mxu0 %v1016
    %1535 = vmatprep.subr.bf16.mxu0 %v1021
    %1536 = vmatpush1.bf16.msra.mxu0 %v1020
    %1537 = vmatprep.subr.bf16.mxu0 %v1025
    %1538 = vmatpush1.bf16.msra.mxu0 %v1024
    %1539 = vmatprep.subr.bf16.mxu0 %v1029
    %1540 = vmatpush1.bf16.msra.mxu0 %v1028
    %1541 = vmatprep.subr.bf16.mxu0 %v1033
    %1542 = vmatpush1.bf16.msra.mxu0 %v1032
    %1543 = vmatprep.subr.bf16.mxu0 %v1037
    %1544 = vmatpush1.bf16.msra.mxu0 %v1036
    %1545 = vmatprep.subr.bf16.mxu0 %v1041
    %1546 = vmatpush1.bf16.msra.mxu0 %v1040
    %1547 = vmatprep.mubr.bf16.mxu0 %v104
    %1548 = vmatmul.mubr.bf16.gmra.mrb[0].mxu0 %v103
    %v1549 = vpop.f32.mrb[0].mxu0
    %v1550 = vadd.f32 %v1509, %v1549
    %v1551 = vpop.f32.mrb[0].mxu0
    %v1552 = vadd.f32 %v1511, %v1551
    %v1553 = vpop.f32.mrb[0].mxu0
    %v1554 = vpop.f32.mrb[0].mxu0
    %1555 = vdwg.mxu0
    %1556 = vmatprep.subr.bf16.mxu0 %v1045
    %1557 = vmatpush1.bf16.msra.mxu0 %v1044
    %1558 = vmatprep.subr.bf16.mxu0 %v1049
    %1559 = vmatpush1.bf16.msra.mxu0 %v1048
    %1560 = vmatprep.subr.bf16.mxu0 %v1053
    %1561 = vmatpush1.bf16.msra.mxu0 %v1052
    %1562 = vmatprep.subr.bf16.mxu0 %v1057
    %1563 = vmatpush1.bf16.msra.mxu0 %v1056
    %1564 = vmatprep.subr.bf16.mxu0 %v1061
    %1565 = vmatpush1.bf16.msra.mxu0 %v1060
    %1566 = vmatprep.subr.bf16.mxu0 %v1065
    %1567 = vmatpush1.bf16.msra.mxu0 %v1064
    %1568 = vmatprep.subr.bf16.mxu0 %v1069
    %1569 = vmatpush1.bf16.msra.mxu0 %v1068
    %1570 = vmatprep.subr.bf16.mxu0 %v1073
    %1571 = vmatpush1.bf16.msra.mxu0 %v1072
    %1572 = vmatprep.subr.bf16.mxu0 %v1077
    %1573 = vmatpush1.bf16.msra.mxu0 %v1076
    %1574 = vmatprep.subr.bf16.mxu0 %v1081
    %1575 = vmatpush1.bf16.msra.mxu0 %v1080
    %1576 = vmatprep.subr.bf16.mxu0 %v1085
    %1577 = vmatpush1.bf16.msra.mxu0 %v1084
    %1578 = vmatprep.subr.bf16.mxu0 %v1089
    %1579 = vmatpush1.bf16.msra.mxu0 %v1088
    %1580 = vmatprep.subr.bf16.mxu0 %v1093
    %1581 = vmatpush1.bf16.msra.mxu0 %v1092
    %1582 = vmatprep.subr.bf16.mxu0 %v1097
    %1583 = vmatpush1.bf16.msra.mxu0 %v1096
    %1584 = vmatprep.subr.bf16.mxu0 %v1101
    %1585 = vmatpush1.bf16.msra.mxu0 %v1100
    %1586 = vmatprep.subr.bf16.mxu0 %v1105
    %1587 = vmatpush1.bf16.msra.mxu0 %v1104
    %1588 = vmatprep.mubr.bf16.mxu0 %v106
    %1589 = vmatmul.mubr.bf16.gmra.mrb[0].mxu0 %v105
    %v1590 = vpop.f32.mrb[0].mxu0
    %v1591 = vadd.f32 %v1550, %v1590
    %v1592 = vpop.f32.mrb[0].mxu0
    %v1593 = vadd.f32 %v1552, %v1592
    %v1594 = vpop.f32.mrb[0].mxu0
    %v1595 = vpop.f32.mrb[0].mxu0
    %1596 = vdwg.mxu0
    %1597 = vmatprep.subr.bf16.mxu0 %v1109
    %1598 = vmatpush1.bf16.msra.mxu0 %v1108
    %1599 = vmatprep.subr.bf16.mxu0 0
    %1600 = vmatpush1.bf16.msra.mxu0 0
    %1601 = vmatprep.subr.bf16.mxu0 0
    %1602 = vmatpush1.bf16.msra.mxu0 0
    %1603 = vmatprep.subr.bf16.mxu0 0
    %1604 = vmatpush1.bf16.msra.mxu0 0
    %1605 = vmatprep.subr.bf16.mxu0 0
    %1606 = vmatpush1.bf16.msra.mxu0 0
    %1607 = vmatprep.subr.bf16.mxu0 0
    %1608 = vmatpush1.bf16.msra.mxu0 0
    %1609 = vmatprep.subr.bf16.mxu0 0
    %1610 = vmatpush1.bf16.msra.mxu0 0
    %1611 = vmatprep.subr.bf16.mxu0 0
    %1612 = vmatpush1.bf16.msra.mxu0 0
    %1613 = vmatprep.subr.bf16.mxu0 0
    %1614 = vmatpush1.bf16.msra.mxu0 0
    %1615 = vmatprep.subr.bf16.mxu0 0
    %1616 = vmatpush1.bf16.msra.mxu0 0
    %1617 = vmatprep.subr.bf16.mxu0 0
    %1618 = vmatpush1.bf16.msra.mxu0 0
    %1619 = vmatprep.subr.bf16.mxu0 0
    %1620 = vmatpush1.bf16.msra.mxu0 0
    %1621 = vmatprep.subr.bf16.mxu0 0
    %1622 = vmatpush1.bf16.msra.mxu0 0
    %1623 = vmatprep.subr.bf16.mxu0 0
    %1624 = vmatpush1.bf16.msra.mxu0 0
    %1625 = vmatprep.subr.bf16.mxu0 0
    %1626 = vmatpush1.bf16.msra.mxu0 0
    %1627 = vmatprep.subr.bf16.mxu0 0
    %1628 = vmatpush1.bf16.msra.mxu0 0
    %1629 = vmatprep.mubr.bf16.mxu0 0
    %1630 = vmatmul.mubr.bf16.gmra.mrb[0].mxu0 %v1308
    %v1631 = vpop.f32.mrb[0].mxu0
    %v1632 = vadd.f32 %v1591, %v1631
    %v1633 = vpop.f32.mrb[0].mxu0
    %v1634 = vadd.f32 %v1593, %v1633
    %v1635 = vpop.f32.mrb[0].mxu0
    %v1636 = vpop.f32.mrb[0].mxu0
    %1637 = vdwg.mxu0
    %vm1638 = vcmp.gt.f32.partialorder %v1468, 0.0
    %vm1639 = vcmp.gt.f32.partialorder %v1470, 0.0
    %vm1640 = vcmp.gt.f32.partialorder %v1632, 0.0
    %vm1641 = vcmp.gt.f32.partialorder %v1634, 0.0
    %v1642 = vmul.f32 %v1468, 0.2
    %v1643 = vmul.f32 %v1470, 0.2
    %v1644 = vmul.f32 %v1632, 0.2
    %v1645 = vmul.f32 %v1634, 0.2
    %v1646 = vsel %vm1638, %v1468, %v1642
    %v1647 = vsel %vm1639, %v1470, %v1643
    %v1648 = vsel %vm1640, %v1632, %v1644
    %v1649 = vsel %vm1641, %v1634, %v1645
    %v1650 = vpack.c.bf16 %v1646, %v1646
    %v1651 = vpack.c.bf16 %v1647, %v1647
    %v1652 = vpack.c.bf16 %v1648, %v1648
    %v1653 = vpack.c.bf16 %v1649, %v1649
    %v1654 = vld [vmem:[#allocation5] sm:$0xff]
    %v1655 = vld [vmem:[#allocation5 + $0x8] sm:$0xff]
    %v1656 = vld [vmem:[#allocation5 + $0x10] sm:$0xff]
    %v1657 = vld [vmem:[#allocation5 + $0x18] sm:$0xff]
    %v1658 = vld [vmem:[#allocation5 + $0x20] sm:$0xff]
    %v1659 = vld [vmem:[#allocation5 + $0x28] sm:$0xff]
    %v1660 = vld [vmem:[#allocation5 + $0x30] sm:$0xff]
    %v1661 = vld [vmem:[#allocation5 + $0x38] sm:$0xff]
    %v1662 = vld [vmem:[#allocation5 + $0x40] sm:$0xff]
    %v1663 = vld [vmem:[#allocation5 + $0x48] sm:$0xff]
    %v1664 = vld [vmem:[#allocation5 + $0x50] sm:$0xff]
    %v1665 = vld [vmem:[#allocation5 + $0x58] sm:$0xff]
    %v1666 = vld [vmem:[#allocation5 + $0x60] sm:$0xff]
    %v1667 = vld [vmem:[#allocation5 + $0x68] sm:$0xff]
    %v1668 = vld [vmem:[#allocation5 + $0x70] sm:$0xff]
    %v1669 = vld [vmem:[#allocation5 + $0x78] sm:$0xff]
    %v1670 = vld [vmem:[#allocation5 + $0x80] sm:$0xff]
    %v1671 = vld [vmem:[#allocation5 + $0x88] sm:$0xff]
    %v1672 = vld [vmem:[#allocation5 + $0x90] sm:$0xff]
    %v1673 = vld [vmem:[#allocation5 + $0x98] sm:$0xff]
    %v1674 = vld [vmem:[#allocation5 + $0xa0] sm:$0xff]
    %v1675 = vld [vmem:[#allocation5 + $0xa8] sm:$0xff]
    %v1676 = vld [vmem:[#allocation5 + $0xb0] sm:$0xff]
    %v1677 = vld [vmem:[#allocation5 + $0xb8] sm:$0xff]
    %v1678 = vld [vmem:[#allocation5 + $0xc0] sm:$0xff]
    %v1679 = vld [vmem:[#allocation5 + $0xc8] sm:$0xff]
    %v1680 = vld [vmem:[#allocation5 + $0xd0] sm:$0xff]
    %v1681 = vld [vmem:[#allocation5 + $0xd8] sm:$0xff]
    %v1682 = vld [vmem:[#allocation5 + $0xe0] sm:$0xff]
    %v1683 = vld [vmem:[#allocation5 + $0xe8] sm:$0xff]
    %v1684 = vld [vmem:[#allocation5 + $0xf0] sm:$0xff]
    %v1685 = vld [vmem:[#allocation5 + $0xf8] sm:$0xff]
    %v1686 = vld [vmem:[#allocation5 + $0x100] sm:$0xff]
    %v1687 = vld [vmem:[#allocation5 + $0x108] sm:$0xff]
    %v1688 = vld [vmem:[#allocation5 + $0x110] sm:$0xff]
    %v1689 = vld [vmem:[#allocation5 + $0x118] sm:$0xff]
    %v1690 = vld [vmem:[#allocation5 + $0x120] sm:$0xff]
    %v1691 = vld [vmem:[#allocation5 + $0x128] sm:$0xff]
    %v1692 = vld [vmem:[#allocation5 + $0x130] sm:$0xff]
    %v1693 = vld [vmem:[#allocation5 + $0x138] sm:$0xff]
    %v1694 = vld [vmem:[#allocation5 + $0x140] sm:$0xff]
    %v1695 = vld [vmem:[#allocation5 + $0x148] sm:$0xff]
    %v1696 = vld [vmem:[#allocation5 + $0x150] sm:$0xff]
    %v1697 = vld [vmem:[#allocation5 + $0x158] sm:$0xff]
    %v1698 = vld [vmem:[#allocation5 + $0x160] sm:$0xff]
    %v1699 = vld [vmem:[#allocation5 + $0x168] sm:$0xff]
    %v1700 = vld [vmem:[#allocation5 + $0x170] sm:$0xff]
    %v1701 = vld [vmem:[#allocation5 + $0x178] sm:$0xff]
    %v1702 = vld [vmem:[#allocation5 + $0x180] sm:$0xff]
    %v1703 = vld [vmem:[#allocation5 + $0x188] sm:$0xff]
    %v1704 = vld [vmem:[#allocation5 + $0x190] sm:$0xff]
    %v1705 = vld [vmem:[#allocation5 + $0x198] sm:$0xff]
    %v1706 = vld [vmem:[#allocation5 + $0x1a0] sm:$0xff]
    %v1707 = vld [vmem:[#allocation5 + $0x1a8] sm:$0xff]
    %v1708 = vld [vmem:[#allocation5 + $0x1b0] sm:$0xff]
    %v1709 = vld [vmem:[#allocation5 + $0x1b8] sm:$0xff]
    %v1710 = vld [vmem:[#allocation5 + $0x1c0] sm:$0xff]
    %v1711 = vld [vmem:[#allocation5 + $0x1c8] sm:$0xff]
    %v1712 = vld [vmem:[#allocation5 + $0x1d0] sm:$0xff]
    %v1713 = vld [vmem:[#allocation5 + $0x1d8] sm:$0xff]
    %v1714 = vld [vmem:[#allocation5 + $0x1e0] sm:$0xff]
    %v1715 = vld [vmem:[#allocation5 + $0x1e8] sm:$0xff]
    %v1716 = vld [vmem:[#allocation5 + $0x1f0] sm:$0xff]
    %v1717 = vld [vmem:[#allocation5 + $0x1f8] sm:$0xff]
    %v1718 = vld [vmem:[%s4] sm:$0x3]
    %v1720 = vlaneseq
    %v1721 = vshrl.u32 %v1720, 7
    %v1722 = vsub.s32 0, %v1721
    %v1723 = vrot.slane %v1718, %v1722
    %v1724 = vlaneseq
    %v1725 = vshrl.u32 %v1724, 7
    %v1726 = vsub.s32 1, %v1725
    %v1727 = vrot.slane %v1718, %v1726
    %v1794 = vunpack.c.l.b16 %v1654
    %v1795 = vunpack.c.h.b16 %v1654
    %v1796 = vunpack.c.l.b16 %v1655
    %v1797 = vunpack.c.h.b16 %v1655
    %v1798 = vunpack.c.l.b16 %v1656
    %v1799 = vunpack.c.h.b16 %v1656
    %v1800 = vunpack.c.l.b16 %v1657
    %v1801 = vunpack.c.h.b16 %v1657
    %v1802 = vunpack.c.l.b16 %v1658
    %v1803 = vunpack.c.h.b16 %v1658
    %v1804 = vunpack.c.l.b16 %v1659
    %v1805 = vunpack.c.h.b16 %v1659
    %v1806 = vunpack.c.l.b16 %v1660
    %v1807 = vunpack.c.h.b16 %v1660
    %v1808 = vunpack.c.l.b16 %v1661
    %v1809 = vunpack.c.h.b16 %v1661
    %v1810 = vunpack.c.l.b16 %v1662
    %v1811 = vunpack.c.h.b16 %v1662
    %v1812 = vunpack.c.l.b16 %v1663
    %v1813 = vunpack.c.h.b16 %v1663
    %v1814 = vunpack.c.l.b16 %v1664
    %v1815 = vunpack.c.h.b16 %v1664
    %v1816 = vunpack.c.l.b16 %v1665
    %v1817 = vunpack.c.h.b16 %v1665
    %v1818 = vunpack.c.l.b16 %v1666
    %v1819 = vunpack.c.h.b16 %v1666
    %v1820 = vunpack.c.l.b16 %v1667
    %v1821 = vunpack.c.h.b16 %v1667
    %v1822 = vunpack.c.l.b16 %v1668
    %v1823 = vunpack.c.h.b16 %v1668
    %v1824 = vunpack.c.l.b16 %v1669
    %v1825 = vunpack.c.h.b16 %v1669
    %v1826 = vunpack.c.l.b16 %v1670
    %v1827 = vunpack.c.h.b16 %v1670
    %v1828 = vunpack.c.l.b16 %v1671
    %v1829 = vunpack.c.h.b16 %v1671
    %v1830 = vunpack.c.l.b16 %v1672
    %v1831 = vunpack.c.h.b16 %v1672
    %v1832 = vunpack.c.l.b16 %v1673
    %v1833 = vunpack.c.h.b16 %v1673
    %v1834 = vunpack.c.l.b16 %v1674
    %v1835 = vunpack.c.h.b16 %v1674
    %v1836 = vunpack.c.l.b16 %v1675
    %v1837 = vunpack.c.h.b16 %v1675
    %v1838 = vunpack.c.l.b16 %v1676
    %v1839 = vunpack.c.h.b16 %v1676
    %v1840 = vunpack.c.l.b16 %v1677
    %v1841 = vunpack.c.h.b16 %v1677
    %v1842 = vunpack.c.l.b16 %v1678
    %v1843 = vunpack.c.h.b16 %v1678
    %v1844 = vunpack.c.l.b16 %v1679
    %v1845 = vunpack.c.h.b16 %v1679
    %v1846 = vunpack.c.l.b16 %v1680
    %v1847 = vunpack.c.h.b16 %v1680
    %v1848 = vunpack.c.l.b16 %v1681
    %v1849 = vunpack.c.h.b16 %v1681
    %v1850 = vunpack.c.l.b16 %v1682
    %v1851 = vunpack.c.h.b16 %v1682
    %v1852 = vunpack.c.l.b16 %v1683
    %v1853 = vunpack.c.h.b16 %v1683
    %v1854 = vunpack.c.l.b16 %v1684
    %v1855 = vunpack.c.h.b16 %v1684
    %v1856 = vunpack.c.l.b16 %v1685
    %v1857 = vunpack.c.h.b16 %v1685
    %v1858 = vunpack.c.l.b16 %v1686
    %v1859 = vunpack.c.h.b16 %v1686
    %v1860 = vunpack.c.l.b16 %v1687
    %v1861 = vunpack.c.h.b16 %v1687
    %v1862 = vunpack.c.l.b16 %v1688
    %v1863 = vunpack.c.h.b16 %v1688
    %v1864 = vunpack.c.l.b16 %v1689
    %v1865 = vunpack.c.h.b16 %v1689
    %v1866 = vunpack.c.l.b16 %v1690
    %v1867 = vunpack.c.h.b16 %v1690
    %v1868 = vunpack.c.l.b16 %v1691
    %v1869 = vunpack.c.h.b16 %v1691
    %v1870 = vunpack.c.l.b16 %v1692
    %v1871 = vunpack.c.h.b16 %v1692
    %v1872 = vunpack.c.l.b16 %v1693
    %v1873 = vunpack.c.h.b16 %v1693
    %v1874 = vunpack.c.l.b16 %v1694
    %v1875 = vunpack.c.h.b16 %v1694
    %v1876 = vunpack.c.l.b16 %v1695
    %v1877 = vunpack.c.h.b16 %v1695
    %v1878 = vunpack.c.l.b16 %v1696
    %v1879 = vunpack.c.h.b16 %v1696
    %v1880 = vunpack.c.l.b16 %v1697
    %v1881 = vunpack.c.h.b16 %v1697
    %v1882 = vunpack.c.l.b16 %v1698
    %v1883 = vunpack.c.h.b16 %v1698
    %v1884 = vunpack.c.l.b16 %v1699
    %v1885 = vunpack.c.h.b16 %v1699
    %v1886 = vunpack.c.l.b16 %v1700
    %v1887 = vunpack.c.h.b16 %v1700
    %v1888 = vunpack.c.l.b16 %v1701
    %v1889 = vunpack.c.h.b16 %v1701
    %v1890 = vunpack.c.l.b16 %v1702
    %v1891 = vunpack.c.h.b16 %v1702
    %v1892 = vunpack.c.l.b16 %v1703
    %v1893 = vunpack.c.h.b16 %v1703
    %v1894 = vunpack.c.l.b16 %v1704
    %v1895 = vunpack.c.h.b16 %v1704
    %v1896 = vunpack.c.l.b16 %v1705
    %v1897 = vunpack.c.h.b16 %v1705
    %v1898 = vunpack.c.l.b16 %v1706
    %v1899 = vunpack.c.h.b16 %v1706
    %v1900 = vunpack.c.l.b16 %v1707
    %v1901 = vunpack.c.h.b16 %v1707
    %v1902 = vunpack.c.l.b16 %v1708
    %v1903 = vunpack.c.h.b16 %v1708
    %v1904 = vunpack.c.l.b16 %v1709
    %v1905 = vunpack.c.h.b16 %v1709
    %v1906 = vunpack.c.l.b16 %v1710
    %v1907 = vunpack.c.h.b16 %v1710
    %v1908 = vunpack.c.l.b16 %v1711
    %v1909 = vunpack.c.h.b16 %v1711
    %v1910 = vunpack.c.l.b16 %v1712
    %v1911 = vunpack.c.h.b16 %v1712
    %v1912 = vunpack.c.l.b16 %v1713
    %v1913 = vunpack.c.h.b16 %v1713
    %v1914 = vunpack.c.l.b16 %v1714
    %v1915 = vunpack.c.h.b16 %v1714
    %v1916 = vunpack.c.l.b16 %v1715
    %v1917 = vunpack.c.h.b16 %v1715
    %v1918 = vunpack.c.l.b16 %v1716
    %v1919 = vunpack.c.h.b16 %v1716
    %v1920 = vunpack.c.l.b16 %v1717
    %v1921 = vunpack.c.h.b16 %v1717
    %v1922 = vpack.c.b16 %v1796, %v1794
    %v1923 = vpack.c.b16 %v1797, %v1795
    %v1924 = vpack.c.b16 %v1800, %v1798
    %v1925 = vpack.c.b16 %v1801, %v1799
    %v1926 = vpack.c.b16 %v1804, %v1802
    %v1927 = vpack.c.b16 %v1805, %v1803
    %v1928 = vpack.c.b16 %v1808, %v1806
    %v1929 = vpack.c.b16 %v1809, %v1807
    %v1930 = vpack.c.b16 %v1812, %v1810
    %v1931 = vpack.c.b16 %v1813, %v1811
    %v1932 = vpack.c.b16 %v1816, %v1814
    %v1933 = vpack.c.b16 %v1817, %v1815
    %v1934 = vpack.c.b16 %v1820, %v1818
    %v1935 = vpack.c.b16 %v1821, %v1819
    %v1936 = vpack.c.b16 %v1824, %v1822
    %v1937 = vpack.c.b16 %v1825, %v1823
    %v1938 = vpack.c.b16 %v1828, %v1826
    %v1939 = vpack.c.b16 %v1829, %v1827
    %v1940 = vpack.c.b16 %v1832, %v1830
    %v1941 = vpack.c.b16 %v1833, %v1831
    %v1942 = vpack.c.b16 %v1836, %v1834
    %v1943 = vpack.c.b16 %v1837, %v1835
    %v1944 = vpack.c.b16 %v1840, %v1838
    %v1945 = vpack.c.b16 %v1841, %v1839
    %v1946 = vpack.c.b16 %v1844, %v1842
    %v1947 = vpack.c.b16 %v1845, %v1843
    %v1948 = vpack.c.b16 %v1848, %v1846
    %v1949 = vpack.c.b16 %v1849, %v1847
    %v1950 = vpack.c.b16 %v1852, %v1850
    %v1951 = vpack.c.b16 %v1853, %v1851
    %v1952 = vpack.c.b16 %v1856, %v1854
    %v1953 = vpack.c.b16 %v1857, %v1855
    %v1954 = vpack.c.b16 %v1860, %v1858
    %v1955 = vpack.c.b16 %v1861, %v1859
    %v1956 = vpack.c.b16 %v1864, %v1862
    %v1957 = vpack.c.b16 %v1865, %v1863
    %v1958 = vpack.c.b16 %v1868, %v1866
    %v1959 = vpack.c.b16 %v1869, %v1867
    %v1960 = vpack.c.b16 %v1872, %v1870
    %v1961 = vpack.c.b16 %v1873, %v1871
    %v1962 = vpack.c.b16 %v1876, %v1874
    %v1963 = vpack.c.b16 %v1877, %v1875
    %v1964 = vpack.c.b16 %v1880, %v1878
    %v1965 = vpack.c.b16 %v1881, %v1879
    %v1966 = vpack.c.b16 %v1884, %v1882
    %v1967 = vpack.c.b16 %v1885, %v1883
    %v1968 = vpack.c.b16 %v1888, %v1886
    %v1969 = vpack.c.b16 %v1889, %v1887
    %v1970 = vpack.c.b16 %v1892, %v1890
    %v1971 = vpack.c.b16 %v1893, %v1891
    %v1972 = vpack.c.b16 %v1896, %v1894
    %v1973 = vpack.c.b16 %v1897, %v1895
    %v1974 = vpack.c.b16 %v1900, %v1898
    %v1975 = vpack.c.b16 %v1901, %v1899
    %v1976 = vpack.c.b16 %v1904, %v1902
    %v1977 = vpack.c.b16 %v1905, %v1903
    %v1978 = vpack.c.b16 %v1908, %v1906
    %v1979 = vpack.c.b16 %v1909, %v1907
    %v1980 = vpack.c.b16 %v1912, %v1910
    %v1981 = vpack.c.b16 %v1913, %v1911
    %v1982 = vpack.c.b16 %v1916, %v1914
    %v1983 = vpack.c.b16 %v1917, %v1915
    %v1984 = vpack.c.b16 %v1920, %v1918
    %v1985 = vpack.c.b16 %v1921, %v1919
    %2050 = vmatprep.subr.bf16.mxu0 %v1923
    %2051 = vmatpush1.bf16.msra.mxu0 %v1922
    %2052 = vmatprep.subr.bf16.mxu0 %v1925
    %2053 = vmatpush1.bf16.msra.mxu0 %v1924
    %2054 = vmatprep.subr.bf16.mxu0 %v1927
    %2055 = vmatpush1.bf16.msra.mxu0 %v1926
    %2056 = vmatprep.subr.bf16.mxu0 %v1929
    %2057 = vmatpush1.bf16.msra.mxu0 %v1928
    %2058 = vmatprep.subr.bf16.mxu0 %v1931
    %2059 = vmatpush1.bf16.msra.mxu0 %v1930
    %2060 = vmatprep.subr.bf16.mxu0 %v1933
    %2061 = vmatpush1.bf16.msra.mxu0 %v1932
    %2062 = vmatprep.subr.bf16.mxu0 %v1935
    %2063 = vmatpush1.bf16.msra.mxu0 %v1934
    %2064 = vmatprep.subr.bf16.mxu0 %v1937
    %2065 = vmatpush1.bf16.msra.mxu0 %v1936
    %2066 = vmatprep.subr.bf16.mxu0 %v1939
    %2067 = vmatpush1.bf16.msra.mxu0 %v1938
    %2068 = vmatprep.subr.bf16.mxu0 %v1941
    %2069 = vmatpush1.bf16.msra.mxu0 %v1940
    %2070 = vmatprep.subr.bf16.mxu0 %v1943
    %2071 = vmatpush1.bf16.msra.mxu0 %v1942
    %2072 = vmatprep.subr.bf16.mxu0 %v1945
    %2073 = vmatpush1.bf16.msra.mxu0 %v1944
    %2074 = vmatprep.subr.bf16.mxu0 %v1947
    %2075 = vmatpush1.bf16.msra.mxu0 %v1946
    %2076 = vmatprep.subr.bf16.mxu0 %v1949
    %2077 = vmatpush1.bf16.msra.mxu0 %v1948
    %2078 = vmatprep.subr.bf16.mxu0 %v1951
    %2079 = vmatpush1.bf16.msra.mxu0 %v1950
    %2080 = vmatprep.subr.bf16.mxu0 %v1953
    %2081 = vmatpush1.bf16.msra.mxu0 %v1952
    %2082 = vmatprep.mubr.bf16.mxu0 %v1651
    %2083 = vmatmul.mubr.bf16.gmra.mrb[0].mxu0 %v1650
    %v2084 = vpop.f32.mrb[0].mxu0
    %v2085 = vadd.f32 %v1723, %v2084
    %v2086 = vpop.f32.mrb[0].mxu0
    %v2087 = vadd.f32 %v1727, %v2086
    %v2088 = vpop.f32.mrb[0].mxu0
    %v2089 = vpop.f32.mrb[0].mxu0
    %2090 = vdwg.mxu0
    %2091 = vmatprep.subr.bf16.mxu0 %v1955
    %2092 = vmatpush1.bf16.msra.mxu0 %v1954
    %2093 = vmatprep.subr.bf16.mxu0 %v1957
    %2094 = vmatpush1.bf16.msra.mxu0 %v1956
    %2095 = vmatprep.subr.bf16.mxu0 %v1959
    %2096 = vmatpush1.bf16.msra.mxu0 %v1958
    %2097 = vmatprep.subr.bf16.mxu0 %v1961
    %2098 = vmatpush1.bf16.msra.mxu0 %v1960
    %2099 = vmatprep.subr.bf16.mxu0 %v1963
    %2100 = vmatpush1.bf16.msra.mxu0 %v1962
    %2101 = vmatprep.subr.bf16.mxu0 %v1965
    %2102 = vmatpush1.bf16.msra.mxu0 %v1964
    %2103 = vmatprep.subr.bf16.mxu0 %v1967
    %2104 = vmatpush1.bf16.msra.mxu0 %v1966
    %2105 = vmatprep.subr.bf16.mxu0 %v1969
    %2106 = vmatpush1.bf16.msra.mxu0 %v1968
    %2107 = vmatprep.subr.bf16.mxu0 %v1971
    %2108 = vmatpush1.bf16.msra.mxu0 %v1970
    %2109 = vmatprep.subr.bf16.mxu0 %v1973
    %2110 = vmatpush1.bf16.msra.mxu0 %v1972
    %2111 = vmatprep.subr.bf16.mxu0 %v1975
    %2112 = vmatpush1.bf16.msra.mxu0 %v1974
    %2113 = vmatprep.subr.bf16.mxu0 %v1977
    %2114 = vmatpush1.bf16.msra.mxu0 %v1976
    %2115 = vmatprep.subr.bf16.mxu0 %v1979
    %2116 = vmatpush1.bf16.msra.mxu0 %v1978
    %2117 = vmatprep.subr.bf16.mxu0 %v1981
    %2118 = vmatpush1.bf16.msra.mxu0 %v1980
    %2119 = vmatprep.subr.bf16.mxu0 %v1983
    %2120 = vmatpush1.bf16.msra.mxu0 %v1982
    %2121 = vmatprep.subr.bf16.mxu0 %v1985
    %2122 = vmatpush1.bf16.msra.mxu0 %v1984
    %2123 = vmatprep.mubr.bf16.mxu0 %v1653
    %2124 = vmatmul.mubr.bf16.gmra.mrb[0].mxu0 %v1652
    %v2125 = vpop.f32.mrb[0].mxu0
    %v2126 = vadd.f32 %v2085, %v2125
    %v2127 = vpop.f32.mrb[0].mxu0
    %v2128 = vadd.f32 %v2087, %v2127
    %v2129 = vpop.f32.mrb[0].mxu0
    %v2130 = vpop.f32.mrb[0].mxu0
    %2131 = vdwg.mxu0
    %vm2132 = vcmp.gt.f32.partialorder %v2126, 0.0
    %vm2133 = vcmp.gt.f32.partialorder %v2128, 0.0
    %v2134 = vmul.f32 %v2126, 0.2
    %v2135 = vmul.f32 %v2128, 0.2
    %v2136 = vsel %vm2132, %v2126, %v2134
    %v2137 = vsel %vm2133, %v2128, %v2135
    %v2138 = vld [vmem:[%s5] sm:$0x3]
    %v2140 = vlaneseq
    %v2141 = vshrl.u32 %v2140, 7
    %v2142 = vsub.s32 0, %v2141
    %v2143 = vrot.slane %v2138, %v2142
    %v2144 = vlaneseq
    %v2145 = vshrl.u32 %v2144, 7
    %v2146 = vsub.s32 1, %v2145
    %v2147 = vrot.slane %v2138, %v2146
    %v2150 = vmul.f32 %v2136, %v2143
    %v2151 = vmul.f32 %v2137, %v2147
    %vm2152 = vcmask 1041408
    %v2153 = vsel %vm2152, %v2150, 0.0
    %v2154 = vsel %vm2152, %v2151, 0.0
    %v2155 = vadd.f32 %v2153, %v2154
    %2156 = vadd.xlane.f32.xlu0 %v2155
    %v2157 = vpop.xlane.xlu0 %2156
    %v2158 = vld [vmem:[#allocation2] sm:$0x1]
    %v2160 = vlaneseq
    %v2161 = vshrl.u32 %v2160, 7
    %v2162 = vsub.s32 0, %v2161
    %v2163 = vrot.slane %v2158, %v2162
    %v2165 = vadd.f32 %v2157, %v2163
    %v2166 = vsub.f32 0.0, %v2165
    %v2167 = vmul.f32 %v2166, 1.442695
    %v2168 = vpow.pop %v2167
    %v2169 = vadd.f32 %v2168, 1.0
    %v2170 = vrcp.pop %v2169
    %v2171 = vmul.f32 1.0, %v2170
    %vm2172 = vcmask 1024
    %2173 = vst.msk [vmem:[%s7] sm:$0x3] %vm2172, %v2171
    // Predicated region
    $region38: #{discriminator_forward.1} parent=1 // pred_check
      _
    $region39: #{discriminator_forward.1} parent=1 // pred_check_branch
      %2175 = sbr.rel (0) target = $region41
    $region40: #{discriminator_forward.1} parent=1 // pred_region
      _
    $region41: #{discriminator_forward.1} parent=1 // pred_fallthru
      _
    // Predicated region
    $region42: #{discriminator_forward.1} parent=1 // pred_check
      _
    $region43: #{discriminator_forward.1} parent=1 // pred_check_branch
      %2177 = sbr.rel (0) target = $region45
    $region44: #{discriminator_forward.1} parent=1 // pred_region
      _
    $region45: #{discriminator_forward.1} parent=1 // pred_fallthru
      _
    %2178 = vsyncpa [#allocation4], 1
    %2179 = vsyncpa [#allocation6], 1

</llo_original>
